<compile_context>
chip_gen: v7x
topology: tpu7x:2x2x1
jax: 0.10.0
libtpu: 0.0.40
codegen_flags: <defaults>
</compile_context>

<pallas_src>
import functools

import jax
import jax.numpy as jnp
from jax.experimental import pallas as pl
from jax.experimental.pallas import tpu as pltpu

EPS = 1e-5  # nn.LayerNorm default


def _layernorm(x, g, b):
    mu = jnp.mean(x, axis=-1, keepdims=True)
    var = jnp.mean((x - mu) ** 2, axis=-1, keepdims=True)  # biased, like nn.LayerNorm
    return (x - mu) * jax.lax.rsqrt(var + EPS) * g + b


# Row layout of the packed f32 parameter slabs.
# vec_d     : (11, D)     rows: qn_g, qn_b, kvn_g, kvn_b, mlpn_g, mlpn_b, bq, bk, bv, bo, b2
# vec_inner : (3, inner)  rows: ln3_g, ln3_b, b1
_VD_QN_G, _VD_QN_B, _VD_KVN_G, _VD_KVN_B, _VD_MN_G, _VD_MN_B = 0, 1, 2, 3, 4, 5
_VD_BQ, _VD_BK, _VD_BV, _VD_BO, _VD_B2 = 6, 7, 8, 9, 10
_VI_LN3_G, _VI_LN3_B, _VI_B1 = 0, 1, 2

_PARAM_ORDER = ("wq", "wkv", "wo", "w1", "w2", "vec_d", "vec_inner")


def cross_attention_kernel(num_heads, q_ref, kv_ref, wq_ref, wkv_ref, wo_ref,
                           w1_ref, w2_ref, vd_ref, vi_ref, out_ref):
    Bt, Nq, D = q_ref.shape          # one batch tile per grid step
    Nk = kv_ref.shape[1]
    H = num_heads
    hd = D // H
    Mq = Bt * Nq
    Mk = Bt * Nk
    scale = 1.0 / (hd ** 0.5)

    # All rows of the batch tile are processed as one (Bt*N, D) matrix for LN + linears.
    # (inputs may be bf16; LN / softmax / residual math stays in f32)
    x_q = q_ref[...].astype(jnp.float32).reshape(Mq, D)
    x_kv = kv_ref[...].astype(jnp.float32).reshape(Mk, D)

    vd = vd_ref[...]                 # (11, D)     f32
    vi = vi_ref[...]                 # (3, inner)  f32

    def row_d(i):  # (1, D) broadcast row
        return vd[i:i + 1, :]

    def row_i(i):  # (1, inner) broadcast row
        return vi[i:i + 1, :]

    # --- attention branch: proj(MHA(q_norm(query), kv_norm(key))) ---
    qn = _layernorm(x_q, row_d(_VD_QN_G), row_d(_VD_QN_B))
    kn = _layernorm(x_kv, row_d(_VD_KVN_G), row_d(_VD_KVN_B))

    # weights are already bf16 in VMEM; cast activations once, accumulate in f32 on the MXU
    q = jnp.dot(qn.astype(jnp.bfloat16), wq_ref[...],
                preferred_element_type=jnp.float32) + row_d(_VD_BQ)
    q = q * scale                                           # fold 1/sqrt(hd) into Q once
    kv = jnp.dot(kn.astype(jnp.bfloat16), wkv_ref[...],
                 preferred_element_type=jnp.float32)        # fused K|V: (Mk, 2D)
    k = kv[:, :D] + row_d(_VD_BK)
    v = kv[:, D:] + row_d(_VD_BV)

    qb = q.reshape(Bt, Nq, D).astype(jnp.bfloat16)
    kb = k.reshape(Bt, Nk, D).astype(jnp.bfloat16)
    vb = v.reshape(Bt, Nk, D).astype(jnp.bfloat16)

    # Heads via static lane slices (no head-major relayout); loop unrolled over small H.
    head_out = []
    for h in range(H):
        lo = h * hd
        qh = qb[:, :, lo:lo + hd]                            # (Bt, Nq, hd)
        kh = kb[:, :, lo:lo + hd]                            # (Bt, Nk, hd)
        vh = vb[:, :, lo:lo + hd]                            # (Bt, Nk, hd)
        s = jnp.einsum('bqd,bkd->bqk', qh, kh,
                       preferred_element_type=jnp.float32)   # (Bt, Nq, Nk) f32 scores
        s = s - jnp.max(s, axis=-1, keepdims=True)           # stable softmax (== F.softmax)
        p = jnp.exp(s)
        p = p * pl.reciprocal(jnp.sum(p, axis=-1, keepdims=True), approx=True)
        head_out.append(jnp.einsum('bqk,bkd->bqd', p.astype(jnp.bfloat16), vh,
                                   preferred_element_type=jnp.float32))
    attn = jnp.concatenate(head_out, axis=-1).reshape(Mq, D)
    attn = jnp.dot(attn.astype(jnp.bfloat16), wo_ref[...],
                   preferred_element_type=jnp.float32) + row_d(_VD_BO)

    x = x_q + attn                                           # residual 1 (raw query)

    # --- MLP branch: fc1 -> GELU -> LayerNorm -> fc2, applied to mlp_norm(x) ---
    xn = _layernorm(x, row_d(_VD_MN_G), row_d(_VD_MN_B))
    hid = jnp.dot(xn.astype(jnp.bfloat16), w1_ref[...],
                  preferred_element_type=jnp.float32) + row_i(_VI_B1)
    # tanh GELU goes to the EUP; use approximate=False for bit-level nn.GELU() (erf) parity
    hid = jax.nn.gelu(hid, approximate=True)
    hid = _layernorm(hid, row_i(_VI_LN3_G), row_i(_VI_LN3_B))
    y = jnp.dot(hid.astype(jnp.bfloat16), w2_ref[...],
                preferred_element_type=jnp.float32) + row_d(_VD_B2)

    out_ref[...] = (x + y).reshape(Bt, Nq, D).astype(out_ref.dtype)  # residual 2
    # TODO(synk): dropout (attention, MLP drop1/drop2) omitted — eval / p=0 semantics.
    # TODO(synk): MoE expert branch (num_experts / expert_idx path) not implemented.
    # TODO(synk): for long sequences add an Nq-tile grid axis / flash-style Nk streaming so
    #             the per-head (Bt, Nq, Nk) scores stay inside v7x's 64 MiB VMEM.
    # TODO(synk): demo D=32 < 128 leaves lanes partially used (masked stores); pad D to a
    #             multiple of 128 in the wrapper for production lane-dense layouts.


def _const_param_spec(shape, ndim):
    """Whole-array block with a constant index_map -> request single buffering."""
    idx = lambda i, n=ndim: (0,) * n
    try:
        # never re-fetched, so one buffer halves resident weight VMEM at no perf cost
        return pl.BlockSpec(shape, idx, pipeline_mode=pl.Buffered(1))
    except (TypeError, AttributeError):   # older jax without pipeline_mode / Buffered
        return pl.BlockSpec(shape, idx)


def _step_act_bytes(bt, Nq, Nk, D, inner, act_itemsize):
    m = bt * Nq
    io = 2 * (m * D + bt * Nk * D + m * D) * act_itemsize            # double-buffered blocks
    work = (m * (3 * D + inner) + bt * Nk * 3 * D + bt * Nq * Nk) * 4  # f32 intermediates
    return io + work


def _pick_block_b(B, Nq, Nk, D, inner, act_itemsize, budget_bytes=8 << 20):
    """Largest divisor of B whose per-step working set fits a modest activation budget."""
    for bt in range(B, 0, -1):
        if B % bt == 0 and _step_act_bytes(bt, Nq, Nk, D, inner, act_itemsize) <= budget_bytes:
            return bt
    return 1


def _vmem_limit_bytes(block_b, Nq, Nk, D, inner, plist, act_itemsize):
    param_bytes = sum(int(p.size) * p.dtype.itemsize for p in plist)  # single-buffered slabs
    est = 2 * (param_bytes + _step_act_bytes(block_b, Nq, Nk, D, inner, act_itemsize))
    try:
        phys = int(pltpu.get_tpu_info().vmem_capacity_bytes)          # 64 MiB v7x, 128 MiB v5e/v6e
    except Exception:
        phys = 64 << 20                                               # conservative (v7x) fallback
    return int(min(max(est, 32 << 20), int(phys * 0.75)))


def cross_attention(query, key, params, num_heads, *, block_b=None):
    """query: (B, Nq, D), key: (B, Nk, D) -> (B, Nq, D).  block_b batch elems per grid step."""
    B, Nq, D = query.shape
    Bk, Nk, Dk = key.shape
    assert B == Bk and D == Dk
    assert D % num_heads == 0
    inner = params["w1"].shape[1]

    if block_b is None:
        block_b = _pick_block_b(B, Nq, Nk, D, inner, query.dtype.itemsize)
    assert B % block_b == 0, "block_b must divide B"

    plist = [params[name] for name in _PARAM_ORDER]

    in_specs = [
        pl.BlockSpec((block_b, Nq, D), lambda i: (i, 0, 0)),
        pl.BlockSpec((block_b, Nk, D), lambda i: (i, 0, 0)),
    ]
    in_specs += [_const_param_spec(p.shape, p.ndim) for p in plist]

    return pl.pallas_call(
        functools.partial(cross_attention_kernel, num_heads),
        out_shape=jax.ShapeDtypeStruct((B, Nq, D), query.dtype),
        grid=(B // block_b,),
        in_specs=in_specs,
        out_specs=pl.BlockSpec((block_b, Nq, D), lambda i: (i, 0, 0)),
        compiler_params=pltpu.CompilerParams(
            # batch-tile axis: shards across v7x's two TensorCores; serial loop on v5e/v6e,
            # which is why block_b is chosen as large as the VMEM budget allows.
            dimension_semantics=("parallel",),
            vmem_limit_bytes=_vmem_limit_bytes(block_b, Nq, Nk, D, inner, plist,
                                               query.dtype.itemsize),
        ),
    )(query, key, *plist)


def init_cross_attention_params(key, hidden_dim, mlp_ratio):
    """Deterministic synthetic parameters, packed for the kernel (weights in bf16)."""
    D = hidden_dim
    inner = int(hidden_dim * mlp_ratio)
    ks = jax.random.split(key, 12)

    def lin_w(k, din, dout):
        return jax.random.normal(k, (din, dout), jnp.float32) / jnp.sqrt(din)

    def lin_b(k, dout):
        return 0.01 * jax.random.normal(k, (dout,), jnp.float32)

    wq, bq = lin_w(ks[0], D, D), lin_b(ks[1], D)
    wk, bk = lin_w(ks[2], D, D), lin_b(ks[3], D)
    wv, bv = lin_w(ks[4], D, D), lin_b(ks[5], D)
    wo, bo = lin_w(ks[6], D, D), lin_b(ks[7], D)
    w1, b1 = lin_w(ks[8], D, inner), lin_b(ks[9], inner)
    w2, b2 = lin_w(ks[10], inner, D), lin_b(ks[11], D)

    ones_d, zeros_d = jnp.ones((D,), jnp.float32), jnp.zeros((D,), jnp.float32)
    ones_i, zeros_i = jnp.ones((inner,), jnp.float32), jnp.zeros((inner,), jnp.float32)

    vec_d = jnp.stack([ones_d, zeros_d,      # q_norm  gamma / beta
                       ones_d, zeros_d,      # kv_norm gamma / beta
                       ones_d, zeros_d,      # mlp_norm gamma / beta
                       bq, bk, bv, bo, b2])          # (11, D) f32
    vec_inner = jnp.stack([ones_i, zeros_i, b1])     # (3, inner) f32: mlp.norm g/b, b1

    # Weight matrices live in HBM as bf16 (half the DMA bytes, half the resident VMEM);
    # the LN / bias vector slabs stay f32 for exact LayerNorm math.
    return {
        "wq": wq.astype(jnp.bfloat16),
        "wkv": jnp.concatenate([wk, wv], axis=1).astype(jnp.bfloat16),  # fused K|V (D, 2D)
        "wo": wo.astype(jnp.bfloat16),
        "w1": w1.astype(jnp.bfloat16),
        "w2": w2.astype(jnp.bfloat16),
        "vec_d": vec_d,
        "vec_inner": vec_inner,
    }


if __name__ == "__main__":
    key = jax.random.PRNGKey(0)
    kq, kk, kp = jax.random.split(key, 3)

    # CrossAttention(hidden_dim=32, num_heads=4, mlp_ratio=2.0, dropout_prob=0.0)
    B, Nq, Nk, D = 2, 16, 8, 32
    num_heads = 4
    mlp_ratio = 2.0

    query = jax.random.normal(kq, (B, Nq, D), jnp.float32)
    kv = jax.random.normal(kk, (B, Nk, D), jnp.float32)
    params = init_cross_attention_params(kp, D, mlp_ratio)

    out = cross_attention(query, kv, params, num_heads)
    out = jax.block_until_ready(out)
    assert out.shape == (B, Nq, D) and out.dtype == jnp.float32
    print("KERNEL_OK")
</pallas_src>

<mosaic_0001>
module attributes {stable_mosaic.version = 11 : i64} {
  func.func @cross_attention_kernel(%arg0: i32, %arg1: memref<2x16x32xf32, #tpu.memory_space<vmem>>, %arg2: memref<2x8x32xf32, #tpu.memory_space<vmem>>, %arg3: memref<32x32xbf16, #tpu.memory_space<vmem>>, %arg4: memref<32x64xbf16, #tpu.memory_space<vmem>>, %arg5: memref<32x32xbf16, #tpu.memory_space<vmem>>, %arg6: memref<32x64xbf16, #tpu.memory_space<vmem>>, %arg7: memref<64x32xbf16, #tpu.memory_space<vmem>>, %arg8: memref<11x32xf32, #tpu.memory_space<vmem>>, %arg9: memref<3x64xf32, #tpu.memory_space<vmem>>, %arg10: memref<2x16x32xf32, #tpu.memory_space<vmem>>) attributes {dimension_semantics = [#tpu.dimension_semantics<parallel>], iteration_bounds = array<i64: 1>, scalar_prefetch = 0 : i64, scratch_operands = 0 : i64, tpu.core_type = #tpu.core_type<tc>, window_params = [{transform_indices = @transform_0, window_bounds = array<i64: 2, 16, 32>}, {transform_indices = @transform_1, window_bounds = array<i64: 2, 8, 32>}, {pipeline_mode = #tpu.pipeline_mode<synchronous>, transform_indices = @transform_2, window_bounds = array<i64: 32, 32>}, {pipeline_mode = #tpu.pipeline_mode<synchronous>, transform_indices = @transform_3, window_bounds = array<i64: 32, 64>}, {pipeline_mode = #tpu.pipeline_mode<synchronous>, transform_indices = @transform_4, window_bounds = array<i64: 32, 32>}, {pipeline_mode = #tpu.pipeline_mode<synchronous>, transform_indices = @transform_5, window_bounds = array<i64: 32, 64>}, {pipeline_mode = #tpu.pipeline_mode<synchronous>, transform_indices = @transform_6, window_bounds = array<i64: 64, 32>}, {pipeline_mode = #tpu.pipeline_mode<synchronous>, transform_indices = @transform_7, window_bounds = array<i64: 11, 32>}, {pipeline_mode = #tpu.pipeline_mode<synchronous>, transform_indices = @transform_8, window_bounds = array<i64: 3, 64>}, {transform_indices = @transform_9, window_bounds = array<i64: 2, 16, 32>}]} {
    %c0 = arith.constant 0 : index
    %c0_0 = arith.constant 0 : index
    %c0_1 = arith.constant 0 : index
    %0 = vector.load %arg1[%c0, %c0_0, %c0_1] : memref<2x16x32xf32, #tpu.memory_space<vmem>>, vector<2x16x32xf32>
    %1 = vector.shape_cast %0 : vector<2x16x32xf32> to vector<32x32xf32>
    %c0_2 = arith.constant 0 : index
    %c0_3 = arith.constant 0 : index
    %c0_4 = arith.constant 0 : index
    %2 = vector.load %arg2[%c0_2, %c0_3, %c0_4] : memref<2x8x32xf32, #tpu.memory_space<vmem>>, vector<2x8x32xf32>
    %3 = vector.shape_cast %2 : vector<2x8x32xf32> to vector<16x32xf32>
    %c0_5 = arith.constant 0 : index
    %c0_6 = arith.constant 0 : index
    %4 = vector.load %arg8[%c0_5, %c0_6] : memref<11x32xf32, #tpu.memory_space<vmem>>, vector<11x32xf32>
    %c0_7 = arith.constant 0 : index
    %c0_8 = arith.constant 0 : index
    %5 = vector.load %arg9[%c0_7, %c0_8] : memref<3x64xf32, #tpu.memory_space<vmem>>, vector<3x64xf32>
    %6 = vector.extract_strided_slice %4 {offsets = [0, 0], sizes = [1, 32], strides = [1, 1]} : vector<11x32xf32> to vector<1x32xf32>
    %7 = vector.extract_strided_slice %4 {offsets = [1, 0], sizes = [1, 32], strides = [1, 1]} : vector<11x32xf32> to vector<1x32xf32>
    %cst = arith.constant dense<0.000000e+00> : vector<32xf32>
    %8 = vector.multi_reduction <add>, %1, %cst [1] : vector<32x32xf32> to vector<32xf32>
    %9 = vector.shape_cast %8 : vector<32xf32> to vector<32x1xf32>
    %cst_9 = arith.constant 3.200000e+01 : f32
    %10 = vector.broadcast %cst_9 : f32 to vector<32x1xf32>
    %11 = arith.divf %9, %10 : vector<32x1xf32>
    %12 = vector.broadcast %11 : vector<32x1xf32> to vector<32x32xf32>
    %13 = arith.subf %1, %12 : vector<32x32xf32>
    %14 = arith.mulf %13, %13 : vector<32x32xf32>
    %cst_10 = arith.constant dense<0.000000e+00> : vector<32xf32>
    %15 = vector.multi_reduction <add>, %14, %cst_10 [1] : vector<32x32xf32> to vector<32xf32>
    %16 = vector.shape_cast %15 : vector<32xf32> to vector<32x1xf32>
    %cst_11 = arith.constant 3.200000e+01 : f32
    %17 = vector.broadcast %cst_11 : f32 to vector<32x1xf32>
    %18 = arith.divf %16, %17 : vector<32x1xf32>
    %19 = vector.broadcast %11 : vector<32x1xf32> to vector<32x32xf32>
    %20 = arith.subf %1, %19 : vector<32x32xf32>
    %cst_12 = arith.constant 9.99999974E-6 : f32
    %21 = vector.broadcast %cst_12 : f32 to vector<32x1xf32>
    %22 = arith.addf %18, %21 : vector<32x1xf32>
    %23 = math.rsqrt %22 : vector<32x1xf32>
    %24 = vector.broadcast %23 : vector<32x1xf32> to vector<32x32xf32>
    %25 = arith.mulf %20, %24 : vector<32x32xf32>
    %26 = vector.broadcast %6 : vector<1x32xf32> to vector<32x32xf32>
    %27 = arith.mulf %25, %26 : vector<32x32xf32>
    %28 = vector.broadcast %7 : vector<1x32xf32> to vector<32x32xf32>
    %29 = arith.addf %27, %28 : vector<32x32xf32>
    %30 = vector.extract_strided_slice %4 {offsets = [2, 0], sizes = [1, 32], strides = [1, 1]} : vector<11x32xf32> to vector<1x32xf32>
    %31 = vector.extract_strided_slice %4 {offsets = [3, 0], sizes = [1, 32], strides = [1, 1]} : vector<11x32xf32> to vector<1x32xf32>
    %cst_13 = arith.constant dense<0.000000e+00> : vector<16xf32>
    %32 = vector.multi_reduction <add>, %3, %cst_13 [1] : vector<16x32xf32> to vector<16xf32>
    %33 = vector.shape_cast %32 : vector<16xf32> to vector<16x1xf32>
    %cst_14 = arith.constant 3.200000e+01 : f32
    %34 = vector.broadcast %cst_14 : f32 to vector<16x1xf32>
    %35 = arith.divf %33, %34 : vector<16x1xf32>
    %36 = vector.broadcast %35 : vector<16x1xf32> to vector<16x32xf32>
    %37 = arith.subf %3, %36 : vector<16x32xf32>
    %38 = arith.mulf %37, %37 : vector<16x32xf32>
    %cst_15 = arith.constant dense<0.000000e+00> : vector<16xf32>
    %39 = vector.multi_reduction <add>, %38, %cst_15 [1] : vector<16x32xf32> to vector<16xf32>
    %40 = vector.shape_cast %39 : vector<16xf32> to vector<16x1xf32>
    %cst_16 = arith.constant 3.200000e+01 : f32
    %41 = vector.broadcast %cst_16 : f32 to vector<16x1xf32>
    %42 = arith.divf %40, %41 : vector<16x1xf32>
    %43 = vector.broadcast %35 : vector<16x1xf32> to vector<16x32xf32>
    %44 = arith.subf %3, %43 : vector<16x32xf32>
    %cst_17 = arith.constant 9.99999974E-6 : f32
    %45 = vector.broadcast %cst_17 : f32 to vector<16x1xf32>
    %46 = arith.addf %42, %45 : vector<16x1xf32>
    %47 = math.rsqrt %46 : vector<16x1xf32>
    %48 = vector.broadcast %47 : vector<16x1xf32> to vector<16x32xf32>
    %49 = arith.mulf %44, %48 : vector<16x32xf32>
    %50 = vector.broadcast %30 : vector<1x32xf32> to vector<16x32xf32>
    %51 = arith.mulf %49, %50 : vector<16x32xf32>
    %52 = vector.broadcast %31 : vector<1x32xf32> to vector<16x32xf32>
    %53 = arith.addf %51, %52 : vector<16x32xf32>
    %54 = arith.truncf %29 : vector<32x32xf32> to vector<32x32xbf16>
    %c0_18 = arith.constant 0 : index
    %c0_19 = arith.constant 0 : index
    %55 = vector.load %arg3[%c0_18, %c0_19] : memref<32x32xbf16, #tpu.memory_space<vmem>>, vector<32x32xbf16>
    %cst_20 = arith.constant dense<0.000000e+00> : vector<32x32xf32>
    %56 = tpu.matmul %54, %55, %cst_20 {dimension_numbers = #tpu.dot_dimension_numbers<[1], [0], [0], [1], [0, 0, 1, 1], [], []>} : vector<32x32xbf16>, vector<32x32xbf16>, vector<32x32xf32> -> vector<32x32xf32>
    %57 = vector.extract_strided_slice %4 {offsets = [6, 0], sizes = [1, 32], strides = [1, 1]} : vector<11x32xf32> to vector<1x32xf32>
    %58 = vector.broadcast %57 : vector<1x32xf32> to vector<32x32xf32>
    %59 = arith.addf %56, %58 : vector<32x32xf32>
    %cst_21 = arith.constant 0.353553385 : f32
    %60 = vector.broadcast %cst_21 : f32 to vector<32x32xf32>
    %61 = arith.mulf %59, %60 : vector<32x32xf32>
    %62 = arith.truncf %53 : vector<16x32xf32> to vector<16x32xbf16>
    %c0_22 = arith.constant 0 : index
    %c0_23 = arith.constant 0 : index
    %63 = vector.load %arg4[%c0_22, %c0_23] : memref<32x64xbf16, #tpu.memory_space<vmem>>, vector<32x64xbf16>
    %cst_24 = arith.constant dense<0.000000e+00> : vector<16x64xf32>
    %64 = tpu.matmul %62, %63, %cst_24 {dimension_numbers = #tpu.dot_dimension_numbers<[1], [0], [0], [1], [0, 0, 1, 1], [], []>} : vector<16x32xbf16>, vector<32x64xbf16>, vector<16x64xf32> -> vector<16x64xf32>
    %65 = vector.extract_strided_slice %64 {offsets = [0, 0], sizes = [16, 32], strides = [1, 1]} : vector<16x64xf32> to vector<16x32xf32>
    %66 = vector.extract_strided_slice %4 {offsets = [7, 0], sizes = [1, 32], strides = [1, 1]} : vector<11x32xf32> to vector<1x32xf32>
    %67 = vector.broadcast %66 : vector<1x32xf32> to vector<16x32xf32>
    %68 = arith.addf %65, %67 : vector<16x32xf32>
    %69 = vector.extract_strided_slice %64 {offsets = [0, 32], sizes = [16, 32], strides = [1, 1]} : vector<16x64xf32> to vector<16x32xf32>
    %70 = vector.extract_strided_slice %4 {offsets = [8, 0], sizes = [1, 32], strides = [1, 1]} : vector<11x32xf32> to vector<1x32xf32>
    %71 = vector.broadcast %70 : vector<1x32xf32> to vector<16x32xf32>
    %72 = arith.addf %69, %71 : vector<16x32xf32>
    %73 = vector.shape_cast %61 : vector<32x32xf32> to vector<2x16x32xf32>
    %74 = arith.truncf %73 : vector<2x16x32xf32> to vector<2x16x32xbf16>
    %75 = vector.shape_cast %68 : vector<16x32xf32> to vector<2x8x32xf32>
    %76 = arith.truncf %75 : vector<2x8x32xf32> to vector<2x8x32xbf16>
    %77 = vector.shape_cast %72 : vector<16x32xf32> to vector<2x8x32xf32>
    %78 = arith.truncf %77 : vector<2x8x32xf32> to vector<2x8x32xbf16>
    %79 = vector.extract_strided_slice %74 {offsets = [0, 0, 0], sizes = [2, 16, 8], strides = [1, 1, 1]} : vector<2x16x32xbf16> to vector<2x16x8xbf16>
    %80 = vector.extract_strided_slice %76 {offsets = [0, 0, 0], sizes = [2, 8, 8], strides = [1, 1, 1]} : vector<2x8x32xbf16> to vector<2x8x8xbf16>
    %81 = vector.extract_strided_slice %78 {offsets = [0, 0, 0], sizes = [2, 8, 8], strides = [1, 1, 1]} : vector<2x8x32xbf16> to vector<2x8x8xbf16>
    "tpu.trace_start"() <{level = 10 : i32, message = "bqd,bkd->bqk"}> : () -> ()
    %cst_25 = arith.constant dense<0.000000e+00> : vector<2x16x8xf32>
    %82 = tpu.matmul %79, %80, %cst_25 {dimension_numbers = #tpu.dot_dimension_numbers<[2], [2], [1], [1], [0, 0, 0, 1, 1, 1], [0], [0]>} : vector<2x16x8xbf16>, vector<2x8x8xbf16>, vector<2x16x8xf32> -> vector<2x16x8xf32>
    "tpu.trace_stop"() : () -> ()
    %cst_26 = arith.constant dense<0xFF800000> : vector<2x16xf32>
    %83 = vector.multi_reduction <maximumf>, %82, %cst_26 [2] : vector<2x16x8xf32> to vector<2x16xf32>
    %84 = vector.shape_cast %83 : vector<2x16xf32> to vector<2x16x1xf32>
    %85 = vector.broadcast %84 : vector<2x16x1xf32> to vector<2x16x8xf32>
    %86 = arith.subf %82, %85 : vector<2x16x8xf32>
    %87 = math.exp %86 : vector<2x16x8xf32>
    %cst_27 = arith.constant dense<0.000000e+00> : vector<2x16xf32>
    %88 = vector.multi_reduction <add>, %87, %cst_27 [2] : vector<2x16x8xf32> to vector<2x16xf32>
    %89 = vector.shape_cast %88 : vector<2x16xf32> to vector<2x16x1xf32>
    %90 = tpu.reciprocal %89 {approx = true} : vector<2x16x1xf32> -> vector<2x16x1xf32>
    %91 = vector.broadcast %90 : vector<2x16x1xf32> to vector<2x16x8xf32>
    %92 = arith.mulf %87, %91 : vector<2x16x8xf32>
    %93 = arith.truncf %92 : vector<2x16x8xf32> to vector<2x16x8xbf16>
    "tpu.trace_start"() <{level = 10 : i32, message = "bqk,bkd->bqd"}> : () -> ()
    %cst_28 = arith.constant dense<0.000000e+00> : vector<2x16x8xf32>
    %94 = tpu.matmul %93, %81, %cst_28 {dimension_numbers = #tpu.dot_dimension_numbers<[2], [1], [1], [2], [0, 0, 0, 1, 1, 2], [0], [0]>} : vector<2x16x8xbf16>, vector<2x8x8xbf16>, vector<2x16x8xf32> -> vector<2x16x8xf32>
    "tpu.trace_stop"() : () -> ()
    %95 = vector.extract_strided_slice %74 {offsets = [0, 0, 8], sizes = [2, 16, 8], strides = [1, 1, 1]} : vector<2x16x32xbf16> to vector<2x16x8xbf16>
    %96 = vector.extract_strided_slice %76 {offsets = [0, 0, 8], sizes = [2, 8, 8], strides = [1, 1, 1]} : vector<2x8x32xbf16> to vector<2x8x8xbf16>
    %97 = vector.extract_strided_slice %78 {offsets = [0, 0, 8], sizes = [2, 8, 8], strides = [1, 1, 1]} : vector<2x8x32xbf16> to vector<2x8x8xbf16>
    "tpu.trace_start"() <{level = 10 : i32, message = "bqd,bkd->bqk"}> : () -> ()
    %cst_29 = arith.constant dense<0.000000e+00> : vector<2x16x8xf32>
    %98 = tpu.matmul %95, %96, %cst_29 {dimension_numbers = #tpu.dot_dimension_numbers<[2], [2], [1], [1], [0, 0, 0, 1, 1, 1], [0], [0]>} : vector<2x16x8xbf16>, vector<2x8x8xbf16>, vector<2x16x8xf32> -> vector<2x16x8xf32>
    "tpu.trace_stop"() : () -> ()
    %cst_30 = arith.constant dense<0xFF800000> : vector<2x16xf32>
    %99 = vector.multi_reduction <maximumf>, %98, %cst_30 [2] : vector<2x16x8xf32> to vector<2x16xf32>
    %100 = vector.shape_cast %99 : vector<2x16xf32> to vector<2x16x1xf32>
    %101 = vector.broadcast %100 : vector<2x16x1xf32> to vector<2x16x8xf32>
    %102 = arith.subf %98, %101 : vector<2x16x8xf32>
    %103 = math.exp %102 : vector<2x16x8xf32>
    %cst_31 = arith.constant dense<0.000000e+00> : vector<2x16xf32>
    %104 = vector.multi_reduction <add>, %103, %cst_31 [2] : vector<2x16x8xf32> to vector<2x16xf32>
    %105 = vector.shape_cast %104 : vector<2x16xf32> to vector<2x16x1xf32>
    %106 = tpu.reciprocal %105 {approx = true} : vector<2x16x1xf32> -> vector<2x16x1xf32>
    %107 = vector.broadcast %106 : vector<2x16x1xf32> to vector<2x16x8xf32>
    %108 = arith.mulf %103, %107 : vector<2x16x8xf32>
    %109 = arith.truncf %108 : vector<2x16x8xf32> to vector<2x16x8xbf16>
    "tpu.trace_start"() <{level = 10 : i32, message = "bqk,bkd->bqd"}> : () -> ()
    %cst_32 = arith.constant dense<0.000000e+00> : vector<2x16x8xf32>
    %110 = tpu.matmul %109, %97, %cst_32 {dimension_numbers = #tpu.dot_dimension_numbers<[2], [1], [1], [2], [0, 0, 0, 1, 1, 2], [0], [0]>} : vector<2x16x8xbf16>, vector<2x8x8xbf16>, vector<2x16x8xf32> -> vector<2x16x8xf32>
    "tpu.trace_stop"() : () -> ()
    %111 = vector.extract_strided_slice %74 {offsets = [0, 0, 16], sizes = [2, 16, 8], strides = [1, 1, 1]} : vector<2x16x32xbf16> to vector<2x16x8xbf16>
    %112 = vector.extract_strided_slice %76 {offsets = [0, 0, 16], sizes = [2, 8, 8], strides = [1, 1, 1]} : vector<2x8x32xbf16> to vector<2x8x8xbf16>
    %113 = vector.extract_strided_slice %78 {offsets = [0, 0, 16], sizes = [2, 8, 8], strides = [1, 1, 1]} : vector<2x8x32xbf16> to vector<2x8x8xbf16>
    "tpu.trace_start"() <{level = 10 : i32, message = "bqd,bkd->bqk"}> : () -> ()
    %cst_33 = arith.constant dense<0.000000e+00> : vector<2x16x8xf32>
    %114 = tpu.matmul %111, %112, %cst_33 {dimension_numbers = #tpu.dot_dimension_numbers<[2], [2], [1], [1], [0, 0, 0, 1, 1, 1], [0], [0]>} : vector<2x16x8xbf16>, vector<2x8x8xbf16>, vector<2x16x8xf32> -> vector<2x16x8xf32>
    "tpu.trace_stop"() : () -> ()
    %cst_34 = arith.constant dense<0xFF800000> : vector<2x16xf32>
    %115 = vector.multi_reduction <maximumf>, %114, %cst_34 [2] : vector<2x16x8xf32> to vector<2x16xf32>
    %116 = vector.shape_cast %115 : vector<2x16xf32> to vector<2x16x1xf32>
    %117 = vector.broadcast %116 : vector<2x16x1xf32> to vector<2x16x8xf32>
    %118 = arith.subf %114, %117 : vector<2x16x8xf32>
    %119 = math.exp %118 : vector<2x16x8xf32>
    %cst_35 = arith.constant dense<0.000000e+00> : vector<2x16xf32>
    %120 = vector.multi_reduction <add>, %119, %cst_35 [2] : vector<2x16x8xf32> to vector<2x16xf32>
    %121 = vector.shape_cast %120 : vector<2x16xf32> to vector<2x16x1xf32>
    %122 = tpu.reciprocal %121 {approx = true} : vector<2x16x1xf32> -> vector<2x16x1xf32>
    %123 = vector.broadcast %122 : vector<2x16x1xf32> to vector<2x16x8xf32>
    %124 = arith.mulf %119, %123 : vector<2x16x8xf32>
    %125 = arith.truncf %124 : vector<2x16x8xf32> to vector<2x16x8xbf16>
    "tpu.trace_start"() <{level = 10 : i32, message = "bqk,bkd->bqd"}> : () -> ()
    %cst_36 = arith.constant dense<0.000000e+00> : vector<2x16x8xf32>
    %126 = tpu.matmul %125, %113, %cst_36 {dimension_numbers = #tpu.dot_dimension_numbers<[2], [1], [1], [2], [0, 0, 0, 1, 1, 2], [0], [0]>} : vector<2x16x8xbf16>, vector<2x8x8xbf16>, vector<2x16x8xf32> -> vector<2x16x8xf32>
    "tpu.trace_stop"() : () -> ()
    %127 = vector.extract_strided_slice %74 {offsets = [0, 0, 24], sizes = [2, 16, 8], strides = [1, 1, 1]} : vector<2x16x32xbf16> to vector<2x16x8xbf16>
    %128 = vector.extract_strided_slice %76 {offsets = [0, 0, 24], sizes = [2, 8, 8], strides = [1, 1, 1]} : vector<2x8x32xbf16> to vector<2x8x8xbf16>
    %129 = vector.extract_strided_slice %78 {offsets = [0, 0, 24], sizes = [2, 8, 8], strides = [1, 1, 1]} : vector<2x8x32xbf16> to vector<2x8x8xbf16>
    "tpu.trace_start"() <{level = 10 : i32, message = "bqd,bkd->bqk"}> : () -> ()
    %cst_37 = arith.constant dense<0.000000e+00> : vector<2x16x8xf32>
    %130 = tpu.matmul %127, %128, %cst_37 {dimension_numbers = #tpu.dot_dimension_numbers<[2], [2], [1], [1], [0, 0, 0, 1, 1, 1], [0], [0]>} : vector<2x16x8xbf16>, vector<2x8x8xbf16>, vector<2x16x8xf32> -> vector<2x16x8xf32>
    "tpu.trace_stop"() : () -> ()
    %cst_38 = arith.constant dense<0xFF800000> : vector<2x16xf32>
    %131 = vector.multi_reduction <maximumf>, %130, %cst_38 [2] : vector<2x16x8xf32> to vector<2x16xf32>
    %132 = vector.shape_cast %131 : vector<2x16xf32> to vector<2x16x1xf32>
    %133 = vector.broadcast %132 : vector<2x16x1xf32> to vector<2x16x8xf32>
    %134 = arith.subf %130, %133 : vector<2x16x8xf32>
    %135 = math.exp %134 : vector<2x16x8xf32>
    %cst_39 = arith.constant dense<0.000000e+00> : vector<2x16xf32>
    %136 = vector.multi_reduction <add>, %135, %cst_39 [2] : vector<2x16x8xf32> to vector<2x16xf32>
    %137 = vector.shape_cast %136 : vector<2x16xf32> to vector<2x16x1xf32>
    %138 = tpu.reciprocal %137 {approx = true} : vector<2x16x1xf32> -> vector<2x16x1xf32>
    %139 = vector.broadcast %138 : vector<2x16x1xf32> to vector<2x16x8xf32>
    %140 = arith.mulf %135, %139 : vector<2x16x8xf32>
    %141 = arith.truncf %140 : vector<2x16x8xf32> to vector<2x16x8xbf16>
    "tpu.trace_start"() <{level = 10 : i32, message = "bqk,bkd->bqd"}> : () -> ()
    %cst_40 = arith.constant dense<0.000000e+00> : vector<2x16x8xf32>
    %142 = tpu.matmul %141, %129, %cst_40 {dimension_numbers = #tpu.dot_dimension_numbers<[2], [1], [1], [2], [0, 0, 0, 1, 1, 2], [0], [0]>} : vector<2x16x8xbf16>, vector<2x8x8xbf16>, vector<2x16x8xf32> -> vector<2x16x8xf32>
    "tpu.trace_stop"() : () -> ()
    %143 = tpu.concatenate %94, %110, %126, %142 in 2 : vector<2x16x8xf32>, vector<2x16x8xf32>, vector<2x16x8xf32>, vector<2x16x8xf32> -> vector<2x16x32xf32>
    %144 = vector.shape_cast %143 : vector<2x16x32xf32> to vector<32x32xf32>
    %145 = arith.truncf %144 : vector<32x32xf32> to vector<32x32xbf16>
    %c0_41 = arith.constant 0 : index
    %c0_42 = arith.constant 0 : index
    %146 = vector.load %arg5[%c0_41, %c0_42] : memref<32x32xbf16, #tpu.memory_space<vmem>>, vector<32x32xbf16>
    %cst_43 = arith.constant dense<0.000000e+00> : vector<32x32xf32>
    %147 = tpu.matmul %145, %146, %cst_43 {dimension_numbers = #tpu.dot_dimension_numbers<[1], [0], [0], [1], [0, 0, 1, 1], [], []>} : vector<32x32xbf16>, vector<32x32xbf16>, vector<32x32xf32> -> vector<32x32xf32>
    %148 = vector.extract_strided_slice %4 {offsets = [9, 0], sizes = [1, 32], strides = [1, 1]} : vector<11x32xf32> to vector<1x32xf32>
    %149 = vector.broadcast %148 : vector<1x32xf32> to vector<32x32xf32>
    %150 = arith.addf %147, %149 : vector<32x32xf32>
    %151 = arith.addf %1, %150 : vector<32x32xf32>
    %152 = vector.extract_strided_slice %4 {offsets = [4, 0], sizes = [1, 32], strides = [1, 1]} : vector<11x32xf32> to vector<1x32xf32>
    %153 = vector.extract_strided_slice %4 {offsets = [5, 0], sizes = [1, 32], strides = [1, 1]} : vector<11x32xf32> to vector<1x32xf32>
    %cst_44 = arith.constant dense<0.000000e+00> : vector<32xf32>
    %154 = vector.multi_reduction <add>, %151, %cst_44 [1] : vector<32x32xf32> to vector<32xf32>
    %155 = vector.shape_cast %154 : vector<32xf32> to vector<32x1xf32>
    %cst_45 = arith.constant 3.200000e+01 : f32
    %156 = vector.broadcast %cst_45 : f32 to vector<32x1xf32>
    %157 = arith.divf %155, %156 : vector<32x1xf32>
    %158 = vector.broadcast %157 : vector<32x1xf32> to vector<32x32xf32>
    %159 = arith.subf %151, %158 : vector<32x32xf32>
    %160 = arith.mulf %159, %159 : vector<32x32xf32>
    %cst_46 = arith.constant dense<0.000000e+00> : vector<32xf32>
    %161 = vector.multi_reduction <add>, %160, %cst_46 [1] : vector<32x32xf32> to vector<32xf32>
    %162 = vector.shape_cast %161 : vector<32xf32> to vector<32x1xf32>
    %cst_47 = arith.constant 3.200000e+01 : f32
    %163 = vector.broadcast %cst_47 : f32 to vector<32x1xf32>
    %164 = arith.divf %162, %163 : vector<32x1xf32>
    %165 = vector.broadcast %157 : vector<32x1xf32> to vector<32x32xf32>
    %166 = arith.subf %151, %165 : vector<32x32xf32>
    %cst_48 = arith.constant 9.99999974E-6 : f32
    %167 = vector.broadcast %cst_48 : f32 to vector<32x1xf32>
    %168 = arith.addf %164, %167 : vector<32x1xf32>
    %169 = math.rsqrt %168 : vector<32x1xf32>
    %170 = vector.broadcast %169 : vector<32x1xf32> to vector<32x32xf32>
    %171 = arith.mulf %166, %170 : vector<32x32xf32>
    %172 = vector.broadcast %152 : vector<1x32xf32> to vector<32x32xf32>
    %173 = arith.mulf %171, %172 : vector<32x32xf32>
    %174 = vector.broadcast %153 : vector<1x32xf32> to vector<32x32xf32>
    %175 = arith.addf %173, %174 : vector<32x32xf32>
    %176 = arith.truncf %175 : vector<32x32xf32> to vector<32x32xbf16>
    %c0_49 = arith.constant 0 : index
    %c0_50 = arith.constant 0 : index
    %177 = vector.load %arg6[%c0_49, %c0_50] : memref<32x64xbf16, #tpu.memory_space<vmem>>, vector<32x64xbf16>
    %cst_51 = arith.constant dense<0.000000e+00> : vector<32x64xf32>
    %178 = tpu.matmul %176, %177, %cst_51 {dimension_numbers = #tpu.dot_dimension_numbers<[1], [0], [0], [1], [0, 0, 1, 1], [], []>} : vector<32x32xbf16>, vector<32x64xbf16>, vector<32x64xf32> -> vector<32x64xf32>
    %179 = vector.extract_strided_slice %5 {offsets = [2, 0], sizes = [1, 64], strides = [1, 1]} : vector<3x64xf32> to vector<1x64xf32>
    %180 = vector.broadcast %179 : vector<1x64xf32> to vector<32x64xf32>
    %181 = arith.addf %178, %180 : vector<32x64xf32>
    %182 = arith.mulf %181, %181 : vector<32x64xf32>
    %183 = arith.mulf %181, %182 : vector<32x64xf32>
    %cst_52 = arith.constant 4.471500e-02 : f32
    %184 = vector.broadcast %cst_52 : f32 to vector<32x64xf32>
    %185 = arith.mulf %184, %183 : vector<32x64xf32>
    %186 = arith.addf %181, %185 : vector<32x64xf32>
    %cst_53 = arith.constant 0.797884583 : f32
    %187 = vector.broadcast %cst_53 : f32 to vector<32x64xf32>
    %188 = arith.mulf %187, %186 : vector<32x64xf32>
    %189 = math.tanh %188 : vector<32x64xf32>
    %cst_54 = arith.constant 1.000000e+00 : f32
    %190 = vector.broadcast %cst_54 : f32 to vector<32x64xf32>
    %191 = arith.addf %190, %189 : vector<32x64xf32>
    %cst_55 = arith.constant 5.000000e-01 : f32
    %192 = vector.broadcast %cst_55 : f32 to vector<32x64xf32>
    %193 = arith.mulf %192, %191 : vector<32x64xf32>
    %194 = arith.mulf %181, %193 : vector<32x64xf32>
    %195 = vector.extract_strided_slice %5 {offsets = [0, 0], sizes = [1, 64], strides = [1, 1]} : vector<3x64xf32> to vector<1x64xf32>
    %196 = vector.extract_strided_slice %5 {offsets = [1, 0], sizes = [1, 64], strides = [1, 1]} : vector<3x64xf32> to vector<1x64xf32>
    %cst_56 = arith.constant dense<0.000000e+00> : vector<32xf32>
    %197 = vector.multi_reduction <add>, %194, %cst_56 [1] : vector<32x64xf32> to vector<32xf32>
    %198 = vector.shape_cast %197 : vector<32xf32> to vector<32x1xf32>
    %cst_57 = arith.constant 6.400000e+01 : f32
    %199 = vector.broadcast %cst_57 : f32 to vector<32x1xf32>
    %200 = arith.divf %198, %199 : vector<32x1xf32>
    %201 = vector.broadcast %200 : vector<32x1xf32> to vector<32x64xf32>
    %202 = arith.subf %194, %201 : vector<32x64xf32>
    %203 = arith.mulf %202, %202 : vector<32x64xf32>
    %cst_58 = arith.constant dense<0.000000e+00> : vector<32xf32>
    %204 = vector.multi_reduction <add>, %203, %cst_58 [1] : vector<32x64xf32> to vector<32xf32>
    %205 = vector.shape_cast %204 : vector<32xf32> to vector<32x1xf32>
    %cst_59 = arith.constant 6.400000e+01 : f32
    %206 = vector.broadcast %cst_59 : f32 to vector<32x1xf32>
    %207 = arith.divf %205, %206 : vector<32x1xf32>
    %208 = vector.broadcast %200 : vector<32x1xf32> to vector<32x64xf32>
    %209 = arith.subf %194, %208 : vector<32x64xf32>
    %cst_60 = arith.constant 9.99999974E-6 : f32
    %210 = vector.broadcast %cst_60 : f32 to vector<32x1xf32>
    %211 = arith.addf %207, %210 : vector<32x1xf32>
    %212 = math.rsqrt %211 : vector<32x1xf32>
    %213 = vector.broadcast %212 : vector<32x1xf32> to vector<32x64xf32>
    %214 = arith.mulf %209, %213 : vector<32x64xf32>
    %215 = vector.broadcast %195 : vector<1x64xf32> to vector<32x64xf32>
    %216 = arith.mulf %214, %215 : vector<32x64xf32>
    %217 = vector.broadcast %196 : vector<1x64xf32> to vector<32x64xf32>
    %218 = arith.addf %216, %217 : vector<32x64xf32>
    %219 = arith.truncf %218 : vector<32x64xf32> to vector<32x64xbf16>
    %c0_61 = arith.constant 0 : index
    %c0_62 = arith.constant 0 : index
    %220 = vector.load %arg7[%c0_61, %c0_62] : memref<64x32xbf16, #tpu.memory_space<vmem>>, vector<64x32xbf16>
    %cst_63 = arith.constant dense<0.000000e+00> : vector<32x32xf32>
    %221 = tpu.matmul %219, %220, %cst_63 {dimension_numbers = #tpu.dot_dimension_numbers<[1], [0], [0], [1], [0, 0, 1, 1], [], []>} : vector<32x64xbf16>, vector<64x32xbf16>, vector<32x32xf32> -> vector<32x32xf32>
    %222 = vector.extract_strided_slice %4 {offsets = [10, 0], sizes = [1, 32], strides = [1, 1]} : vector<11x32xf32> to vector<1x32xf32>
    %223 = vector.broadcast %222 : vector<1x32xf32> to vector<32x32xf32>
    %224 = arith.addf %221, %223 : vector<32x32xf32>
    %225 = arith.addf %151, %224 : vector<32x32xf32>
    %226 = vector.shape_cast %225 : vector<32x32xf32> to vector<2x16x32xf32>
    %c0_64 = arith.constant 0 : index
    %c0_65 = arith.constant 0 : index
    %c0_66 = arith.constant 0 : index
    %227 = vector.load %arg10[%c0_64, %c0_65, %c0_66] : memref<2x16x32xf32, #tpu.memory_space<vmem>>, vector<2x16x32xf32>
    tpu.vector_store %arg10[%c0_64, %c0_65, %c0_66], %226 {strides = array<i32>} : memref<2x16x32xf32, #tpu.memory_space<vmem>>, vector<2x16x32xf32>,
    return
  }
  func.func @transform_0(%arg0: i32) -> (i32, i32, i32) {
    %c0_i32 = arith.constant 0 : i32
    %c0_i32_0 = arith.constant 0 : i32
    %c0_i32_1 = arith.constant 0 : i32
    return %arg0, %c0_i32, %c0_i32_0 : i32, i32, i32
  }
  func.func @transform_1(%arg0: i32) -> (i32, i32, i32) {
    %c0_i32 = arith.constant 0 : i32
    %c0_i32_0 = arith.constant 0 : i32
    %c0_i32_1 = arith.constant 0 : i32
    return %arg0, %c0_i32, %c0_i32_0 : i32, i32, i32
  }
  func.func @transform_2(%arg0: i32) -> (i32, i32) {
    %c0_i32 = arith.constant 0 : i32
    %c0_i32_0 = arith.constant 0 : i32
    %c0_i32_1 = arith.constant 0 : i32
    return %c0_i32, %c0_i32_0 : i32, i32
  }
  func.func @transform_3(%arg0: i32) -> (i32, i32) {
    %c0_i32 = arith.constant 0 : i32
    %c0_i32_0 = arith.constant 0 : i32
    %c0_i32_1 = arith.constant 0 : i32
    return %c0_i32, %c0_i32_0 : i32, i32
  }
  func.func @transform_4(%arg0: i32) -> (i32, i32) {
    %c0_i32 = arith.constant 0 : i32
    %c0_i32_0 = arith.constant 0 : i32
    %c0_i32_1 = arith.constant 0 : i32
    return %c0_i32, %c0_i32_0 : i32, i32
  }
  func.func @transform_5(%arg0: i32) -> (i32, i32) {
    %c0_i32 = arith.constant 0 : i32
    %c0_i32_0 = arith.constant 0 : i32
    %c0_i32_1 = arith.constant 0 : i32
    return %c0_i32, %c0_i32_0 : i32, i32
  }
  func.func @transform_6(%arg0: i32) -> (i32, i32) {
    %c0_i32 = arith.constant 0 : i32
    %c0_i32_0 = arith.constant 0 : i32
    %c0_i32_1 = arith.constant 0 : i32
    return %c0_i32, %c0_i32_0 : i32, i32
  }
  func.func @transform_7(%arg0: i32) -> (i32, i32) {
    %c0_i32 = arith.constant 0 : i32
    %c0_i32_0 = arith.constant 0 : i32
    %c0_i32_1 = arith.constant 0 : i32
    return %c0_i32, %c0_i32_0 : i32, i32
  }
  func.func @transform_8(%arg0: i32) -> (i32, i32) {
    %c0_i32 = arith.constant 0 : i32
    %c0_i32_0 = arith.constant 0 : i32
    %c0_i32_1 = arith.constant 0 : i32
    return %c0_i32, %c0_i32_0 : i32, i32
  }
  func.func @transform_9(%arg0: i32) -> (i32, i32, i32) {
    %c0_i32 = arith.constant 0 : i32
    %c0_i32_0 = arith.constant 0 : i32
    %c0_i32_1 = arith.constant 0 : i32
    return %arg0, %c0_i32, %c0_i32_0 : i32, i32, i32
  }
}

</mosaic_0001>

<llo_original>
// kernel: tpu_custom_call.1
$region0: #{tpu_custom_call.1}
  #allocation0 [shape = 'u32[]', space=smem, size = 0x4, offset = 0x4, fixed_abs, tag = 'smem constant byte address 0x4 - core index']
  #allocation1 [shape = 'u32[144,128]{1,0:T(1,128)}', space=vmem, size = 0x12000, scoped, tag = 'internal scratch']
  %s0 = inlined_call_operand.vmem [shape: f32[2,16,32], index: 0, kind: input, shape index: {}]
  %s1 = inlined_call_operand.vmem [shape: f32[2,8,32], index: 1, kind: input, shape index: {}]
  %s2 = inlined_call_operand.hbm [shape: bf16[32,32], index: 2, kind: input, shape index: {}]
  %s3 = inlined_call_operand.hbm [shape: bf16[32,64], index: 3, kind: input, shape index: {}]
  %s4 = inlined_call_operand.hbm [shape: bf16[32,32], index: 4, kind: input, shape index: {}]
  %s5 = inlined_call_operand.hbm [shape: bf16[32,64], index: 5, kind: input, shape index: {}]
  %s6 = inlined_call_operand.vmem [shape: bf16[64,32], index: 6, kind: input, shape index: {}]
  %s7 = inlined_call_operand.hbm [shape: f32[11,32], index: 7, kind: input, shape index: {}]
  %s8 = inlined_call_operand.vmem [shape: f32[3,64], index: 8, kind: input, shape index: {}]
  %s9 = inlined_call_operand.hbm [shape: f32[2,16,32], index: 9, kind: output, shape index: {}]
  %s10 = sld [smem:[#allocation0]]
  $region66: #{tpu_custom_call.1} parent=0
    _
  %s12 = ssub.s32 1, %s10
  %s13 = scalar_select 0, %s12, %s10
  $region1: #{tpu_custom_call.1} parent=0
    #allocation2 [shape = 'u8[8192]{0}', space=vmem, size = 0x2000, scoped, tag = 'input window, operand 2, single buffered']
    #allocation3 [shape = 's32[1]{0}', space=sflag, size = 0x4, scoped, tag = 'scoped memory for tpu_custom_call.1']
    #allocation4 [shape = 's32[1]{0}', space=sflag, size = 0x4, scoped, tag = 'scoped memory for tpu_custom_call.1']
    #allocation5 [shape = 'u8[8192]{0}', space=vmem, size = 0x2000, scoped, tag = 'input window, operand 3, single buffered']
    #allocation6 [shape = 's32[1]{0}', space=sflag, size = 0x4, scoped, tag = 'scoped memory for tpu_custom_call.1']
    #allocation7 [shape = 'u8[8192]{0}', space=vmem, size = 0x2000, scoped, tag = 'input window, operand 4, single buffered']
    #allocation8 [shape = 'u8[8192]{0}', space=vmem, size = 0x2000, scoped, tag = 'input window, operand 5, single buffered']
    #allocation9 [shape = 's32[1]{0}', space=sflag, size = 0x4, scoped, tag = 'scoped memory for tpu_custom_call.1']
    #allocation10 [shape = 'u8[8192]{0}', space=vmem, size = 0x2000, scoped, tag = 'input window, operand 7, single buffered']
    #allocation11 [shape = 'u8[16384]{0}', space=vmem, size = 0x4000, scoped, tag = 'output window, operand 0, single buffered']
    %14 = vsyncpa [#allocation3], 0
    %15 = vsyncpa [#allocation6], 0
    %16 = vsyncpa [#allocation9], 0
    %17 = vsyncpa [#allocation4], 0
    // Predicated region
    $region2: #{tpu_custom_call.1} parent=1 // pred_check
      _
    $region3: #{tpu_custom_call.1} parent=1 // pred_check_branch
      %19 = sbr.rel (0) target = $region5
    $region4: #{tpu_custom_call.1} parent=1 // pred_region
      _
    $region5: #{tpu_custom_call.1} parent=1 // pred_fallthru
      _
    // Predicated region
    $region6: #{tpu_custom_call.1} parent=1 // pred_check
      _
    $region7: #{tpu_custom_call.1} parent=1 // pred_check_branch
      %21 = sbr.rel (0) target = $region9
    $region8: #{tpu_custom_call.1} parent=1 // pred_region
      _
    $region9: #{tpu_custom_call.1} parent=1 // pred_fallthru
      _
    // Predicated region
    $region10: #{tpu_custom_call.1} parent=1 // pred_check
      _
    $region11: #{tpu_custom_call.1} parent=1 // pred_check_branch
      %23 = sbr.rel (0) target = $region13
    $region12: #{tpu_custom_call.1} parent=1 // pred_region
      %s25 = ssub.s32 256, 256
      %26 = vsyncadd [#allocation3], %s25
      %s27 = sshll.u32 [#allocation2], 4
      %s28 = int_to_ptr.vmem [resolvable:$true] %s27
      %33 = dma.hbm_to_vmem [thread:$0]  %s2, 256, %s28, [#allocation3], 64, 64, 4
    $region13: #{tpu_custom_call.1} parent=1 // pred_fallthru
      _
    // Predicated region
    $region14: #{tpu_custom_call.1} parent=1 // pred_check
      _
    $region15: #{tpu_custom_call.1} parent=1 // pred_check_branch
      %35 = sbr.rel (0) target = $region17
    $region16: #{tpu_custom_call.1} parent=1 // pred_region
      %s37 = ssub.s32 256, 256
      %38 = vsyncadd [#allocation6], %s37
      %s39 = sshll.u32 [#allocation5], 4
      %s40 = int_to_ptr.vmem [resolvable:$true] %s39
      %45 = dma.hbm_to_vmem [thread:$0]  %s3, 256, %s40, [#allocation6], 64, 64, 4
    $region17: #{tpu_custom_call.1} parent=1 // pred_fallthru
      _
    // Predicated region
    $region18: #{tpu_custom_call.1} parent=1 // pred_check
      _
    $region19: #{tpu_custom_call.1} parent=1 // pred_check_branch
      %47 = sbr.rel (0) target = $region21
    $region20: #{tpu_custom_call.1} parent=1 // pred_region
      %s49 = ssub.s32 256, 256
      %50 = vsyncadd [#allocation6], %s49
      %s51 = sshll.u32 [#allocation7], 4
      %s52 = int_to_ptr.vmem [resolvable:$true] %s51
      %57 = dma.hbm_to_vmem [thread:$0]  %s4, 256, %s52, [#allocation6], 64, 64, 4
    $region21: #{tpu_custom_call.1} parent=1 // pred_fallthru
      _
    // Predicated region
    $region22: #{tpu_custom_call.1} parent=1 // pred_check
      _
    $region23: #{tpu_custom_call.1} parent=1 // pred_check_branch
      %59 = sbr.rel (0) target = $region25
    $region24: #{tpu_custom_call.1} parent=1 // pred_region
      %s61 = ssub.s32 256, 256
      %62 = vsyncadd [#allocation9], %s61
      %s63 = sshll.u32 [#allocation8], 4
      %s64 = int_to_ptr.vmem [resolvable:$true] %s63
      %69 = dma.hbm_to_vmem [thread:$0]  %s5, 256, %s64, [#allocation9], 64, 64, 4
    $region25: #{tpu_custom_call.1} parent=1 // pred_fallthru
      _
    // Predicated region
    $region26: #{tpu_custom_call.1} parent=1 // pred_check
      _
    $region27: #{tpu_custom_call.1} parent=1 // pred_check_branch
      %71 = sbr.rel (0) target = $region29
    $region28: #{tpu_custom_call.1} parent=1 // pred_region
      _
    $region29: #{tpu_custom_call.1} parent=1 // pred_fallthru
      _
    // Predicated region
    $region30: #{tpu_custom_call.1} parent=1 // pred_check
      _
    $region31: #{tpu_custom_call.1} parent=1 // pred_check_branch
      %73 = sbr.rel (0) target = $region33
    $region32: #{tpu_custom_call.1} parent=1 // pred_region
      %s75 = ssub.s32 256, 256
      %76 = vsyncadd [#allocation9], %s75
      %s77 = sshll.u32 [#allocation10], 4
      %s78 = int_to_ptr.vmem [resolvable:$true] %s77
      %83 = dma.hbm_to_vmem [thread:$0]  %s7, 256, %s78, [#allocation9], 128, 128, 8
    $region33: #{tpu_custom_call.1} parent=1 // pred_fallthru
      _
    // Predicated region
    $region34: #{tpu_custom_call.1} parent=1 // pred_check
      _
    $region35: #{tpu_custom_call.1} parent=1 // pred_check_branch
      %85 = sbr.rel (0) target = $region37
    $region36: #{tpu_custom_call.1} parent=1 // pred_region
      _
    $region37: #{tpu_custom_call.1} parent=1 // pred_fallthru
      _
    // Predicated region
    $region38: #{tpu_custom_call.1} parent=1 // pred_check
      _
    $region39: #{tpu_custom_call.1} parent=1 // pred_check_branch
      %87 = sbr.rel (0) target = $region41
    $region40: #{tpu_custom_call.1} parent=1 // pred_region
      %88 = dma.done [#allocation3], 256
    $region41: #{tpu_custom_call.1} parent=1 // pred_fallthru
      _
    // Predicated region
    $region42: #{tpu_custom_call.1} parent=1 // pred_check
      _
    $region43: #{tpu_custom_call.1} parent=1 // pred_check_branch
      %90 = sbr.rel (0) target = $region45
    $region44: #{tpu_custom_call.1} parent=1 // pred_region
      %91 = dma.done [#allocation6], 256
    $region45: #{tpu_custom_call.1} parent=1 // pred_fallthru
      _
    // Predicated region
    $region46: #{tpu_custom_call.1} parent=1 // pred_check
      _
    $region47: #{tpu_custom_call.1} parent=1 // pred_check_branch
      %93 = sbr.rel (0) target = $region49
    $region48: #{tpu_custom_call.1} parent=1 // pred_region
      %94 = dma.done [#allocation6], 256
    $region49: #{tpu_custom_call.1} parent=1 // pred_fallthru
      _
    // Predicated region
    $region50: #{tpu_custom_call.1} parent=1 // pred_check
      _
    $region51: #{tpu_custom_call.1} parent=1 // pred_check_branch
      %96 = sbr.rel (0) target = $region53
    $region52: #{tpu_custom_call.1} parent=1 // pred_region
      %97 = dma.done [#allocation9], 256
    $region53: #{tpu_custom_call.1} parent=1 // pred_fallthru
      _
    // Predicated region
    $region54: #{tpu_custom_call.1} parent=1 // pred_check
      _
    $region55: #{tpu_custom_call.1} parent=1 // pred_check_branch
      %99 = sbr.rel (0) target = $region57
    $region56: #{tpu_custom_call.1} parent=1 // pred_region
      %100 = dma.done [#allocation9], 256
    $region57: #{tpu_custom_call.1} parent=1 // pred_fallthru
      _
    %v102 = vld [vmem:[%s0] sm:$0xff]
    %v103 = vld [vmem:[%s0 + $0x8] sm:$0xff]
    %v104 = vld [vmem:[%s0 + $0x10] sm:$0xff]
    %v105 = vld [vmem:[%s0 + $0x18] sm:$0xff]
    %v106 = vld [vmem:[%s1] sm:$0xff]
    %v107 = vld [vmem:[%s1 + $0x8] sm:$0xff]
    %v108 = vld [vmem:[#allocation10] sm:$0xff]
    %v109 = vld [vmem:[#allocation10 + $0x8] sm:$0x7]
    %v110 = vld [vmem:[%s8] sm:$0x7]
    %vm111 = vcmask 261120
    %v112 = vsel %vm111, %v102, 0.0
    %113 = vadd.xlane.f32.xlu0 %v112
    %v114 = vpop.xlane.xlu0 %113
    %v115 = vsel %vm111, %v103, 0.0
    %116 = vadd.xlane.f32.xlu0 %v115
    %v117 = vpop.xlane.xlu0 %116
    %v118 = vsel %vm111, %v104, 0.0
    %119 = vadd.xlane.f32.xlu0 %v118
    %v120 = vpop.xlane.xlu0 %119
    %v121 = vsel %vm111, %v105, 0.0
    %122 = vadd.xlane.f32.xlu0 %v121
    %v123 = vpop.xlane.xlu0 %122
    %v124 = vrcp.pop 32.0
    %v125 = vmul.f32 %v114, %v124
    %v126 = vmul.f32 %v117, %v124
    %v127 = vmul.f32 %v120, %v124
    %v128 = vmul.f32 %v123, %v124
    %v129 = vsub.f32 %v102, %v125
    %v130 = vsub.f32 %v103, %v126
    %v131 = vsub.f32 %v104, %v127
    %v132 = vsub.f32 %v105, %v128
    %v133 = vmul.f32 %v129, %v129
    %v134 = vmul.f32 %v130, %v130
    %v135 = vmul.f32 %v131, %v131
    %v136 = vmul.f32 %v132, %v132
    %v137 = vsel %vm111, %v133, 0.0
    %138 = vadd.xlane.f32.xlu0 %v137
    %v139 = vpop.xlane.xlu0 %138
    %v140 = vsel %vm111, %v134, 0.0
    %141 = vadd.xlane.f32.xlu0 %v140
    %v142 = vpop.xlane.xlu0 %141
    %v143 = vsel %vm111, %v135, 0.0
    %144 = vadd.xlane.f32.xlu0 %v143
    %v145 = vpop.xlane.xlu0 %144
    %v146 = vsel %vm111, %v136, 0.0
    %147 = vadd.xlane.f32.xlu0 %v146
    %v148 = vpop.xlane.xlu0 %147
    %v149 = vmul.f32 %v139, %v124
    %v150 = vmul.f32 %v142, %v124
    %v151 = vmul.f32 %v145, %v124
    %v152 = vmul.f32 %v148, %v124
    %v153 = vadd.f32 %v149, 1e-05
    %v154 = vadd.f32 %v150, 1e-05
    %v155 = vadd.f32 %v151, 1e-05
    %v156 = vadd.f32 %v152, 1e-05
    %v157 = vrsqrt.pop %v153
    %v158 = vrsqrt.pop %v154
    %v159 = vrsqrt.pop %v155
    %v160 = vrsqrt.pop %v156
    %v161 = vmul.f32 %v129, %v157
    %v162 = vmul.f32 %v130, %v158
    %v163 = vmul.f32 %v131, %v159
    %v164 = vmul.f32 %v132, %v160
    %v165 = vlaneseq
    %v166 = vshrl.u32 %v165, 7
    %v167 = vsub.s32 0, %v166
    %v168 = vrot.slane %v108, %v167
    %v169 = vmul.f32 %v161, %v168
    %v170 = vmul.f32 %v162, %v168
    %v171 = vmul.f32 %v163, %v168
    %v172 = vmul.f32 %v164, %v168
    %v173 = vlaneseq
    %v174 = vshrl.u32 %v173, 7
    %v175 = vsub.s32 1, %v174
    %v176 = vrot.slane %v108, %v175
    %v177 = vadd.f32 %v169, %v176
    %v178 = vadd.f32 %v170, %v176
    %v179 = vadd.f32 %v171, %v176
    %v180 = vadd.f32 %v172, %v176
    %v181 = vsel %vm111, %v106, 0.0
    %182 = vadd.xlane.f32.xlu0 %v181
    %v183 = vpop.xlane.xlu0 %182
    %v184 = vsel %vm111, %v107, 0.0
    %185 = vadd.xlane.f32.xlu0 %v184
    %v186 = vpop.xlane.xlu0 %185
    %v187 = vmul.f32 %v183, %v124
    %v188 = vmul.f32 %v186, %v124
    %v189 = vsub.f32 %v106, %v187
    %v190 = vsub.f32 %v107, %v188
    %v191 = vmul.f32 %v189, %v189
    %v192 = vmul.f32 %v190, %v190
    %v193 = vsel %vm111, %v191, 0.0
    %194 = vadd.xlane.f32.xlu0 %v193
    %v195 = vpop.xlane.xlu0 %194
    %v196 = vsel %vm111, %v192, 0.0
    %197 = vadd.xlane.f32.xlu0 %v196
    %v198 = vpop.xlane.xlu0 %197
    %v199 = vmul.f32 %v195, %v124
    %v200 = vmul.f32 %v198, %v124
    %v201 = vadd.f32 %v199, 1e-05
    %v202 = vadd.f32 %v200, 1e-05
    %v203 = vrsqrt.pop %v201
    %v204 = vrsqrt.pop %v202
    %v205 = vmul.f32 %v189, %v203
    %v206 = vmul.f32 %v190, %v204
    %v207 = vlaneseq
    %v208 = vshrl.u32 %v207, 7
    %v209 = vsub.s32 2, %v208
    %v210 = vrot.slane %v108, %v209
    %v211 = vmul.f32 %v205, %v210
    %v212 = vmul.f32 %v206, %v210
    %v213 = vlaneseq
    %v214 = vshrl.u32 %v213, 7
    %v215 = vsub.s32 3, %v214
    %v216 = vrot.slane %v108, %v215
    %v217 = vadd.f32 %v211, %v216
    %v218 = vadd.f32 %v212, %v216
    %v219 = vpack.c.bf16 %v178, %v177
    %v220 = vpack.c.bf16 %v180, %v179
    %v221 = vld [vmem:[#allocation2] sm:$0xf]
    %v222 = vld [vmem:[#allocation2 + $0x4] sm:$0xf]
    %v223 = vld [vmem:[#allocation2 + $0x8] sm:$0xf]
    %v224 = vld [vmem:[#allocation2 + $0xc] sm:$0xf]
    %v225 = vlaneseq
    %v226 = vshrl.u32 %v225, 7
    %v227 = vsub.s32 6, %v226
    %v228 = vrot.slane %v108, %v227
    %v233 = vunpack.c.l.b16 %v221
    %v234 = vunpack.c.l.b16 %v222
    %v235 = vunpack.c.l.b16 %v223
    %v236 = vunpack.c.l.b16 %v224
    %v237 = vpack.c.b16 %v234, %v233
    %v238 = vpack.c.b16 %v236, %v235
    %v242 = vsel %vm111, %v219, 0
    %v245 = vsel %vm111, %v220, 0
    %247 = vmatprep.subr.bf16.mxu0 0
    %248 = vmatpush1.bf16.msra.mxu0 %v237
    %249 = vmatprep.subr.bf16.mxu0 0
    %250 = vmatpush1.bf16.msra.mxu0 %v238
    %251 = vmatprep.subr.bf16.mxu0 0
    %252 = vmatpush1.bf16.msra.mxu0 0
    %253 = vmatprep.subr.bf16.mxu0 0
    %254 = vmatpush1.bf16.msra.mxu0 0
    %255 = vmatprep.subr.bf16.mxu0 0
    %256 = vmatpush1.bf16.msra.mxu0 0
    %257 = vmatprep.subr.bf16.mxu0 0
    %258 = vmatpush1.bf16.msra.mxu0 0
    %259 = vmatprep.subr.bf16.mxu0 0
    %260 = vmatpush1.bf16.msra.mxu0 0
    %261 = vmatprep.subr.bf16.mxu0 0
    %262 = vmatpush1.bf16.msra.mxu0 0
    %263 = vmatprep.subr.bf16.mxu0 0
    %264 = vmatpush1.bf16.msra.mxu0 0
    %265 = vmatprep.subr.bf16.mxu0 0
    %266 = vmatpush1.bf16.msra.mxu0 0
    %267 = vmatprep.subr.bf16.mxu0 0
    %268 = vmatpush1.bf16.msra.mxu0 0
    %269 = vmatprep.subr.bf16.mxu0 0
    %270 = vmatpush1.bf16.msra.mxu0 0
    %271 = vmatprep.subr.bf16.mxu0 0
    %272 = vmatpush1.bf16.msra.mxu0 0
    %273 = vmatprep.subr.bf16.mxu0 0
    %274 = vmatpush1.bf16.msra.mxu0 0
    %275 = vmatprep.subr.bf16.mxu0 0
    %276 = vmatpush1.bf16.msra.mxu0 0
    %277 = vmatprep.subr.bf16.mxu0 0
    %278 = vmatpush1.bf16.msra.mxu0 0
    %279 = vmatprep.mubr.bf16.mxu0 0
    %280 = vmatmul.mubr.bf16.gmra.mrb[0].mxu0 %v242
    %v281 = vpop.f32.mrb[0].mxu0
    %v282 = vadd.f32 %v228, %v281
    %v283 = vpop.f32.mrb[0].mxu0
    %v284 = vpop.f32.mrb[0].mxu0
    %v285 = vadd.f32 %v228, %v284
    %v286 = vpop.f32.mrb[0].mxu0
    %287 = vmatprep.mubr.bf16.mxu0 0
    %288 = vmatmul.mubr.bf16.gmra.mrb[0].mxu0 %v245
    %v289 = vpop.f32.mrb[0].mxu0
    %v290 = vadd.f32 %v228, %v289
    %v291 = vpop.f32.mrb[0].mxu0
    %v292 = vpop.f32.mrb[0].mxu0
    %v293 = vadd.f32 %v228, %v292
    %v294 = vpop.f32.mrb[0].mxu0
    %295 = vdwg.mxu0
    %v296 = vmul.f32 %v282, 0.35355338
    %v297 = vmul.f32 %v285, 0.35355338
    %v298 = vmul.f32 %v290, 0.35355338
    %v299 = vmul.f32 %v293, 0.35355338
    %v300 = vpack.c.bf16 %v218, %v217
    %v301 = vld [vmem:[#allocation5] sm:$0xf]
    %v302 = vld [vmem:[#allocation5 + $0x4] sm:$0xf]
    %v303 = vld [vmem:[#allocation5 + $0x8] sm:$0xf]
    %v304 = vld [vmem:[#allocation5 + $0xc] sm:$0xf]
    %v309 = vunpack.c.l.b16 %v301
    %v310 = vunpack.c.l.b16 %v302
    %v311 = vunpack.c.l.b16 %v303
    %v312 = vunpack.c.l.b16 %v304
    %v313 = vpack.c.b16 %v310, %v309
    %v314 = vpack.c.b16 %v312, %v311
    %v318 = vsel %vm111, %v300, 0
    %320 = vmatprep.subr.bf16.mxu0 0
    %321 = vmatpush1.bf16.msra.mxu0 %v313
    %322 = vmatprep.subr.bf16.mxu0 0
    %323 = vmatpush1.bf16.msra.mxu0 %v314
    %324 = vmatprep.subr.bf16.mxu0 0
    %325 = vmatpush1.bf16.msra.mxu0 0
    %326 = vmatprep.subr.bf16.mxu0 0
    %327 = vmatpush1.bf16.msra.mxu0 0
    %328 = vmatprep.subr.bf16.mxu0 0
    %329 = vmatpush1.bf16.msra.mxu0 0
    %330 = vmatprep.subr.bf16.mxu0 0
    %331 = vmatpush1.bf16.msra.mxu0 0
    %332 = vmatprep.subr.bf16.mxu0 0
    %333 = vmatpush1.bf16.msra.mxu0 0
    %334 = vmatprep.subr.bf16.mxu0 0
    %335 = vmatpush1.bf16.msra.mxu0 0
    %336 = vmatprep.subr.bf16.mxu0 0
    %337 = vmatpush1.bf16.msra.mxu0 0
    %338 = vmatprep.subr.bf16.mxu0 0
    %339 = vmatpush1.bf16.msra.mxu0 0
    %340 = vmatprep.subr.bf16.mxu0 0
    %341 = vmatpush1.bf16.msra.mxu0 0
    %342 = vmatprep.subr.bf16.mxu0 0
    %343 = vmatpush1.bf16.msra.mxu0 0
    %344 = vmatprep.subr.bf16.mxu0 0
    %345 = vmatpush1.bf16.msra.mxu0 0
    %346 = vmatprep.subr.bf16.mxu0 0
    %347 = vmatpush1.bf16.msra.mxu0 0
    %348 = vmatprep.subr.bf16.mxu0 0
    %349 = vmatpush1.bf16.msra.mxu0 0
    %350 = vmatprep.subr.bf16.mxu0 0
    %351 = vmatpush1.bf16.msra.mxu0 0
    %352 = vmatprep.mubr.bf16.mxu0 0
    %353 = vmatmul.mubr.bf16.gmra.mrb[0].mxu0 %v318
    %v354 = vpop.f32.mrb[0].mxu0
    %v355 = vadd.f32 0.0, %v354
    %v356 = vpop.f32.mrb[0].mxu0
    %v357 = vpop.f32.mrb[0].mxu0
    %v358 = vadd.f32 0.0, %v357
    %v359 = vpop.f32.mrb[0].mxu0
    %360 = vdwg.mxu0
    %v361 = vlaneseq
    %v362 = vshrl.u32 %v361, 7
    %v363 = vsub.s32 7, %v362
    %v364 = vrot.slane %v108, %v363
    %v365 = vadd.f32 %v355, %v364
    %v366 = vadd.f32 %v358, %v364
    %v367 = vlaneseq
    %v368 = vshrl.u32 %v367, 7
    %v369 = vsub.s32 0, %v368
    %v370 = vrot.slane %v109, %v369
    %372 = vrot.lane.b32.xlu0 %v370, 32
    %v373 = vpop.permute.xlu0 %372
    %v375 = vadd.f32 %v355, %v373
    %v376 = vadd.f32 %v358, %v373
    %v377 = vpack.c.bf16 %v297, %v296
    %v378 = vpack.c.bf16 %v299, %v298
    %v379 = vpack.c.bf16 %v365, %v365
    %v380 = vpack.c.bf16 %v366, %v366
    %v381 = vpack.c.bf16 %v375, %v375
    %v382 = vpack.c.bf16 %v376, %v376
    %vm383 = vcmask 64512
    %v385 = vsel %vm383, %v377, 0
    %v388 = vsel %vm383, %v379, 0
    %390 = vmatprep.subr.bf16.mxu0 0
    %391 = vmatpush1.bf16.xpose.msra.mxu0 %v388
    %392 = vmatprep.subr.bf16.mxu0 0
    %393 = vmatpush1.bf16.xpose.msra.mxu0 0
    %394 = vmatprep.subr.bf16.mxu0 0
    %395 = vmatpush1.bf16.xpose.msra.mxu0 0
    %396 = vmatprep.subr.bf16.mxu0 0
    %397 = vmatpush1.bf16.xpose.msra.mxu0 0
    %398 = vmatprep.subr.bf16.mxu0 0
    %399 = vmatpush1.bf16.xpose.msra.mxu0 0
    %400 = vmatprep.subr.bf16.mxu0 0
    %401 = vmatpush1.bf16.xpose.msra.mxu0 0
    %402 = vmatprep.subr.bf16.mxu0 0
    %403 = vmatpush1.bf16.xpose.msra.mxu0 0
    %404 = vmatprep.subr.bf16.mxu0 0
    %405 = vmatpush1.bf16.xpose.msra.mxu0 0
    %406 = vmatprep.subr.bf16.mxu0 0
    %407 = vmatpush1.bf16.xpose.msra.mxu0 0
    %408 = vmatprep.subr.bf16.mxu0 0
    %409 = vmatpush1.bf16.xpose.msra.mxu0 0
    %410 = vmatprep.subr.bf16.mxu0 0
    %411 = vmatpush1.bf16.xpose.msra.mxu0 0
    %412 = vmatprep.subr.bf16.mxu0 0
    %413 = vmatpush1.bf16.xpose.msra.mxu0 0
    %414 = vmatprep.subr.bf16.mxu0 0
    %415 = vmatpush1.bf16.xpose.msra.mxu0 0
    %416 = vmatprep.subr.bf16.mxu0 0
    %417 = vmatpush1.bf16.xpose.msra.mxu0 0
    %418 = vmatprep.subr.bf16.mxu0 0
    %419 = vmatpush1.bf16.xpose.msra.mxu0 0
    %420 = vmatprep.subr.bf16.mxu0 0
    %421 = vmatpush1.bf16.xpose.msra.mxu0 0
    %422 = vmatprep.mubr.bf16.mxu0 0
    %423 = vmatmul.mubr.bf16.gmra.mrb[0].mxu0 %v385
    %v424 = vpop.f32.mrb[0].mxu0
    %v425 = vadd.f32 0.0, %v424
    %v426 = vpop.f32.mrb[0].mxu0
    %v427 = vpop.f32.mrb[0].mxu0
    %v428 = vadd.f32 0.0, %v427
    %v429 = vpop.f32.mrb[0].mxu0
    %430 = vdwg.mxu0
    %v432 = vsel %vm383, %v378, 0
    %v435 = vsel %vm383, %v380, 0
    %437 = vmatprep.subr.bf16.mxu0 0
    %438 = vmatpush1.bf16.xpose.msra.mxu0 %v435
    %439 = vmatprep.subr.bf16.mxu0 0
    %440 = vmatpush1.bf16.xpose.msra.mxu0 0
    %441 = vmatprep.subr.bf16.mxu0 0
    %442 = vmatpush1.bf16.xpose.msra.mxu0 0
    %443 = vmatprep.subr.bf16.mxu0 0
    %444 = vmatpush1.bf16.xpose.msra.mxu0 0
    %445 = vmatprep.subr.bf16.mxu0 0
    %446 = vmatpush1.bf16.xpose.msra.mxu0 0
    %447 = vmatprep.subr.bf16.mxu0 0
    %448 = vmatpush1.bf16.xpose.msra.mxu0 0
    %449 = vmatprep.subr.bf16.mxu0 0
    %450 = vmatpush1.bf16.xpose.msra.mxu0 0
    %451 = vmatprep.subr.bf16.mxu0 0
    %452 = vmatpush1.bf16.xpose.msra.mxu0 0
    %453 = vmatprep.subr.bf16.mxu0 0
    %454 = vmatpush1.bf16.xpose.msra.mxu0 0
    %455 = vmatprep.subr.bf16.mxu0 0
    %456 = vmatpush1.bf16.xpose.msra.mxu0 0
    %457 = vmatprep.subr.bf16.mxu0 0
    %458 = vmatpush1.bf16.xpose.msra.mxu0 0
    %459 = vmatprep.subr.bf16.mxu0 0
    %460 = vmatpush1.bf16.xpose.msra.mxu0 0
    %461 = vmatprep.subr.bf16.mxu0 0
    %462 = vmatpush1.bf16.xpose.msra.mxu0 0
    %463 = vmatprep.subr.bf16.mxu0 0
    %464 = vmatpush1.bf16.xpose.msra.mxu0 0
    %465 = vmatprep.subr.bf16.mxu0 0
    %466 = vmatpush1.bf16.xpose.msra.mxu0 0
    %467 = vmatprep.subr.bf16.mxu0 0
    %468 = vmatpush1.bf16.xpose.msra.mxu0 0
    %469 = vmatprep.mubr.bf16.mxu0 0
    %470 = vmatmul.mubr.bf16.gmra.mrb[0].mxu0 %v432
    %v471 = vpop.f32.mrb[0].mxu0
    %v472 = vadd.f32 0.0, %v471
    %v473 = vpop.f32.mrb[0].mxu0
    %v474 = vpop.f32.mrb[0].mxu0
    %v475 = vadd.f32 0.0, %v474
    %v476 = vpop.f32.mrb[0].mxu0
    %477 = vdwg.mxu0
    %v478 = vsel %vm383, %v425, -inf
    %479 = vmax.xlane.f32.xlu0 %v478
    %v480 = vpop.xlane.xlu0 %479
    %v481 = vsel %vm383, %v428, -inf
    %482 = vmax.xlane.f32.xlu0 %v481
    %v483 = vpop.xlane.xlu0 %482
    %v484 = vsel %vm383, %v472, -inf
    %485 = vmax.xlane.f32.xlu0 %v484
    %v486 = vpop.xlane.xlu0 %485
    %v487 = vsel %vm383, %v475, -inf
    %488 = vmax.xlane.f32.xlu0 %v487
    %v489 = vpop.xlane.xlu0 %488
    %v490 = vsub.f32 %v425, %v480
    %v491 = vsub.f32 %v428, %v483
    %v492 = vsub.f32 %v472, %v486
    %v493 = vsub.f32 %v475, %v489
    %v494 = vmul.f32 %v490, 1.442695
    %v495 = vpow.pop %v494
    %v496 = vmul.f32 %v491, 1.442695
    %v497 = vpow.pop %v496
    %v498 = vmul.f32 %v492, 1.442695
    %v499 = vpow.pop %v498
    %v500 = vmul.f32 %v493, 1.442695
    %v501 = vpow.pop %v500
    %v502 = vsel %vm383, %v495, 0.0
    %503 = vadd.xlane.f32.xlu0 %v502
    %v504 = vpop.xlane.xlu0 %503
    %v505 = vsel %vm383, %v497, 0.0
    %506 = vadd.xlane.f32.xlu0 %v505
    %v507 = vpop.xlane.xlu0 %506
    %v508 = vsel %vm383, %v499, 0.0
    %509 = vadd.xlane.f32.xlu0 %v508
    %v510 = vpop.xlane.xlu0 %509
    %v511 = vsel %vm383, %v501, 0.0
    %512 = vadd.xlane.f32.xlu0 %v511
    %v513 = vpop.xlane.xlu0 %512
    %v514 = vrcp.pop %v504
    %v515 = vrcp.pop %v507
    %v516 = vrcp.pop %v510
    %v517 = vrcp.pop %v513
    %v518 = vmul.f32 %v495, %v514
    %v519 = vmul.f32 %v497, %v515
    %v520 = vmul.f32 %v499, %v516
    %v521 = vmul.f32 %v501, %v517
    %v522 = vpack.c.bf16 %v519, %v518
    %v523 = vpack.c.bf16 %v521, %v520
    %525 = vrot.lane.b32.xlu0 %v381, 96
    %v526 = vpop.permute.xlu0 %525
    %v528 = vsel %vm383, %v522, 0
    %vm530 = vcmask 1043456
    %v532 = vsel %vm530, %v526, 0
    %534 = vmatprep.subr.bf16.mxu0 0
    %535 = vmatpush1.bf16.msra.mxu0 %v532
    %536 = vmatprep.subr.bf16.mxu0 0
    %537 = vmatpush1.bf16.msra.mxu0 0
    %538 = vmatprep.subr.bf16.mxu0 0
    %539 = vmatpush1.bf16.msra.mxu0 0
    %540 = vmatprep.subr.bf16.mxu0 0
    %541 = vmatpush1.bf16.msra.mxu0 0
    %542 = vmatprep.subr.bf16.mxu0 0
    %543 = vmatpush1.bf16.msra.mxu0 0
    %544 = vmatprep.subr.bf16.mxu0 0
    %545 = vmatpush1.bf16.msra.mxu0 0
    %546 = vmatprep.subr.bf16.mxu0 0
    %547 = vmatpush1.bf16.msra.mxu0 0
    %548 = vmatprep.subr.bf16.mxu0 0
    %549 = vmatpush1.bf16.msra.mxu0 0
    %550 = vmatprep.subr.bf16.mxu0 0
    %551 = vmatpush1.bf16.msra.mxu0 0
    %552 = vmatprep.subr.bf16.mxu0 0
    %553 = vmatpush1.bf16.msra.mxu0 0
    %554 = vmatprep.subr.bf16.mxu0 0
    %555 = vmatpush1.bf16.msra.mxu0 0
    %556 = vmatprep.subr.bf16.mxu0 0
    %557 = vmatpush1.bf16.msra.mxu0 0
    %558 = vmatprep.subr.bf16.mxu0 0
    %559 = vmatpush1.bf16.msra.mxu0 0
    %560 = vmatprep.subr.bf16.mxu0 0
    %561 = vmatpush1.bf16.msra.mxu0 0
    %562 = vmatprep.subr.bf16.mxu0 0
    %563 = vmatpush1.bf16.msra.mxu0 0
    %564 = vmatprep.subr.bf16.mxu0 0
    %565 = vmatpush1.bf16.msra.mxu0 0
    %566 = vmatprep.mubr.bf16.mxu0 0
    %567 = vmatmul.mubr.bf16.gmra.mrb[0].mxu0 %v528
    %v568 = vpop.f32.mrb[0].mxu0
    %v569 = vadd.f32 0.0, %v568
    %v570 = vpop.f32.mrb[0].mxu0
    %v571 = vpop.f32.mrb[0].mxu0
    %v572 = vadd.f32 0.0, %v571
    %v573 = vpop.f32.mrb[0].mxu0
    %574 = vdwg.mxu0
    %576 = vrot.lane.b32.xlu0 %v382, 96
    %v577 = vpop.permute.xlu0 %576
    %v579 = vsel %vm383, %v523, 0
    %v582 = vsel %vm530, %v577, 0
    %584 = vmatprep.subr.bf16.mxu0 0
    %585 = vmatpush1.bf16.msra.mxu0 %v582
    %586 = vmatprep.subr.bf16.mxu0 0
    %587 = vmatpush1.bf16.msra.mxu0 0
    %588 = vmatprep.subr.bf16.mxu0 0
    %589 = vmatpush1.bf16.msra.mxu0 0
    %590 = vmatprep.subr.bf16.mxu0 0
    %591 = vmatpush1.bf16.msra.mxu0 0
    %592 = vmatprep.subr.bf16.mxu0 0
    %593 = vmatpush1.bf16.msra.mxu0 0
    %594 = vmatprep.subr.bf16.mxu0 0
    %595 = vmatpush1.bf16.msra.mxu0 0
    %596 = vmatprep.subr.bf16.mxu0 0
    %597 = vmatpush1.bf16.msra.mxu0 0
    %598 = vmatprep.subr.bf16.mxu0 0
    %599 = vmatpush1.bf16.msra.mxu0 0
    %600 = vmatprep.subr.bf16.mxu0 0
    %601 = vmatpush1.bf16.msra.mxu0 0
    %602 = vmatprep.subr.bf16.mxu0 0
    %603 = vmatpush1.bf16.msra.mxu0 0
    %604 = vmatprep.subr.bf16.mxu0 0
    %605 = vmatpush1.bf16.msra.mxu0 0
    %606 = vmatprep.subr.bf16.mxu0 0
    %607 = vmatpush1.bf16.msra.mxu0 0
    %608 = vmatprep.subr.bf16.mxu0 0
    %609 = vmatpush1.bf16.msra.mxu0 0
    %610 = vmatprep.subr.bf16.mxu0 0
    %611 = vmatpush1.bf16.msra.mxu0 0
    %612 = vmatprep.subr.bf16.mxu0 0
    %613 = vmatpush1.bf16.msra.mxu0 0
    %614 = vmatprep.subr.bf16.mxu0 0
    %615 = vmatpush1.bf16.msra.mxu0 0
    %616 = vmatprep.mubr.bf16.mxu0 0
    %617 = vmatmul.mubr.bf16.gmra.mrb[0].mxu0 %v579
    %v618 = vpop.f32.mrb[0].mxu0
    %v619 = vadd.f32 0.0, %v618
    %v620 = vpop.f32.mrb[0].mxu0
    %v621 = vpop.f32.mrb[0].mxu0
    %v622 = vadd.f32 0.0, %v621
    %v623 = vpop.f32.mrb[0].mxu0
    %624 = vdwg.mxu0
    %626 = vrot.lane.b32.xlu0 %v377, 120
    %v627 = vpop.permute.xlu0 %626
    %629 = vrot.lane.b32.xlu0 %v379, 120
    %v630 = vpop.permute.xlu0 %629
    %v632 = vsel %vm383, %v627, 0
    %v635 = vsel %vm383, %v630, 0
    %637 = vmatprep.subr.bf16.mxu0 0
    %638 = vmatpush1.bf16.xpose.msra.mxu0 %v635
    %639 = vmatprep.subr.bf16.mxu0 0
    %640 = vmatpush1.bf16.xpose.msra.mxu0 0
    %641 = vmatprep.subr.bf16.mxu0 0
    %642 = vmatpush1.bf16.xpose.msra.mxu0 0
    %643 = vmatprep.subr.bf16.mxu0 0
    %644 = vmatpush1.bf16.xpose.msra.mxu0 0
    %645 = vmatprep.subr.bf16.mxu0 0
    %646 = vmatpush1.bf16.xpose.msra.mxu0 0
    %647 = vmatprep.subr.bf16.mxu0 0
    %648 = vmatpush1.bf16.xpose.msra.mxu0 0
    %649 = vmatprep.subr.bf16.mxu0 0
    %650 = vmatpush1.bf16.xpose.msra.mxu0 0
    %651 = vmatprep.subr.bf16.mxu0 0
    %652 = vmatpush1.bf16.xpose.msra.mxu0 0
    %653 = vmatprep.subr.bf16.mxu0 0
    %654 = vmatpush1.bf16.xpose.msra.mxu0 0
    %655 = vmatprep.subr.bf16.mxu0 0
    %656 = vmatpush1.bf16.xpose.msra.mxu0 0
    %657 = vmatprep.subr.bf16.mxu0 0
    %658 = vmatpush1.bf16.xpose.msra.mxu0 0
    %659 = vmatprep.subr.bf16.mxu0 0
    %660 = vmatpush1.bf16.xpose.msra.mxu0 0
    %661 = vmatprep.subr.bf16.mxu0 0
    %662 = vmatpush1.bf16.xpose.msra.mxu0 0
    %663 = vmatprep.subr.bf16.mxu0 0
    %664 = vmatpush1.bf16.xpose.msra.mxu0 0
    %665 = vmatprep.subr.bf16.mxu0 0
    %666 = vmatpush1.bf16.xpose.msra.mxu0 0
    %667 = vmatprep.subr.bf16.mxu0 0
    %668 = vmatpush1.bf16.xpose.msra.mxu0 0
    %669 = vmatprep.mubr.bf16.mxu0 0
    %670 = vmatmul.mubr.bf16.gmra.mrb[0].mxu0 %v632
    %v671 = vpop.f32.mrb[0].mxu0
    %v672 = vadd.f32 0.0, %v671
    %v673 = vpop.f32.mrb[0].mxu0
    %v674 = vpop.f32.mrb[0].mxu0
    %v675 = vadd.f32 0.0, %v674
    %v676 = vpop.f32.mrb[0].mxu0
    %677 = vdwg.mxu0
    %679 = vrot.lane.b32.xlu0 %v378, 120
    %v680 = vpop.permute.xlu0 %679
    %682 = vrot.lane.b32.xlu0 %v380, 120
    %v683 = vpop.permute.xlu0 %682
    %v685 = vsel %vm383, %v680, 0
    %v688 = vsel %vm383, %v683, 0
    %690 = vmatprep.subr.bf16.mxu0 0
    %691 = vmatpush1.bf16.xpose.msra.mxu0 %v688
    %692 = vmatprep.subr.bf16.mxu0 0
    %693 = vmatpush1.bf16.xpose.msra.mxu0 0
    %694 = vmatprep.subr.bf16.mxu0 0
    %695 = vmatpush1.bf16.xpose.msra.mxu0 0
    %696 = vmatprep.subr.bf16.mxu0 0
    %697 = vmatpush1.bf16.xpose.msra.mxu0 0
    %698 = vmatprep.subr.bf16.mxu0 0
    %699 = vmatpush1.bf16.xpose.msra.mxu0 0
    %700 = vmatprep.subr.bf16.mxu0 0
    %701 = vmatpush1.bf16.xpose.msra.mxu0 0
    %702 = vmatprep.subr.bf16.mxu0 0
    %703 = vmatpush1.bf16.xpose.msra.mxu0 0
    %704 = vmatprep.subr.bf16.mxu0 0
    %705 = vmatpush1.bf16.xpose.msra.mxu0 0
    %706 = vmatprep.subr.bf16.mxu0 0
    %707 = vmatpush1.bf16.xpose.msra.mxu0 0
    %708 = vmatprep.subr.bf16.mxu0 0
    %709 = vmatpush1.bf16.xpose.msra.mxu0 0
    %710 = vmatprep.subr.bf16.mxu0 0
    %711 = vmatpush1.bf16.xpose.msra.mxu0 0
    %712 = vmatprep.subr.bf16.mxu0 0
    %713 = vmatpush1.bf16.xpose.msra.mxu0 0
    %714 = vmatprep.subr.bf16.mxu0 0
    %715 = vmatpush1.bf16.xpose.msra.mxu0 0
    %716 = vmatprep.subr.bf16.mxu0 0
    %717 = vmatpush1.bf16.xpose.msra.mxu0 0
    %718 = vmatprep.subr.bf16.mxu0 0
    %719 = vmatpush1.bf16.xpose.msra.mxu0 0
    %720 = vmatprep.subr.bf16.mxu0 0
    %721 = vmatpush1.bf16.xpose.msra.mxu0 0
    %722 = vmatprep.mubr.bf16.mxu0 0
    %723 = vmatmul.mubr.bf16.gmra.mrb[0].mxu0 %v685
    %v724 = vpop.f32.mrb[0].mxu0
    %v725 = vadd.f32 0.0, %v724
    %v726 = vpop.f32.mrb[0].mxu0
    %v727 = vpop.f32.mrb[0].mxu0
    %v728 = vadd.f32 0.0, %v727
    %v729 = vpop.f32.mrb[0].mxu0
    %730 = vdwg.mxu0
    %v731 = vsel %vm383, %v672, -inf
    %732 = vmax.xlane.f32.xlu0 %v731
    %v733 = vpop.xlane.xlu0 %732
    %v734 = vsel %vm383, %v675, -inf
    %735 = vmax.xlane.f32.xlu0 %v734
    %v736 = vpop.xlane.xlu0 %735
    %v737 = vsel %vm383, %v725, -inf
    %738 = vmax.xlane.f32.xlu0 %v737
    %v739 = vpop.xlane.xlu0 %738
    %v740 = vsel %vm383, %v728, -inf
    %741 = vmax.xlane.f32.xlu0 %v740
    %v742 = vpop.xlane.xlu0 %741
    %v743 = vsub.f32 %v672, %v733
    %v744 = vsub.f32 %v675, %v736
    %v745 = vsub.f32 %v725, %v739
    %v746 = vsub.f32 %v728, %v742
    %v747 = vmul.f32 %v743, 1.442695
    %v748 = vpow.pop %v747
    %v749 = vmul.f32 %v744, 1.442695
    %v750 = vpow.pop %v749
    %v751 = vmul.f32 %v745, 1.442695
    %v752 = vpow.pop %v751
    %v753 = vmul.f32 %v746, 1.442695
    %v754 = vpow.pop %v753
    %v755 = vsel %vm383, %v748, 0.0
    %756 = vadd.xlane.f32.xlu0 %v755
    %v757 = vpop.xlane.xlu0 %756
    %v758 = vsel %vm383, %v750, 0.0
    %759 = vadd.xlane.f32.xlu0 %v758
    %v760 = vpop.xlane.xlu0 %759
    %v761 = vsel %vm383, %v752, 0.0
    %762 = vadd.xlane.f32.xlu0 %v761
    %v763 = vpop.xlane.xlu0 %762
    %v764 = vsel %vm383, %v754, 0.0
    %765 = vadd.xlane.f32.xlu0 %v764
    %v766 = vpop.xlane.xlu0 %765
    %v767 = vrcp.pop %v757
    %v768 = vrcp.pop %v760
    %v769 = vrcp.pop %v763
    %v770 = vrcp.pop %v766
    %v771 = vmul.f32 %v748, %v767
    %v772 = vmul.f32 %v750, %v768
    %v773 = vmul.f32 %v752, %v769
    %v774 = vmul.f32 %v754, %v770
    %v775 = vpack.c.bf16 %v772, %v771
    %v776 = vpack.c.bf16 %v774, %v773
    %777 = vrot.lane.b32.xlu0 %v381, 88
    %v778 = vpop.permute.xlu0 %777
    %v780 = vsel %vm383, %v775, 0
    %v783 = vsel %vm530, %v778, 0
    %785 = vmatprep.subr.bf16.mxu0 0
    %786 = vmatpush1.bf16.msra.mxu0 %v783
    %787 = vmatprep.subr.bf16.mxu0 0
    %788 = vmatpush1.bf16.msra.mxu0 0
    %789 = vmatprep.subr.bf16.mxu0 0
    %790 = vmatpush1.bf16.msra.mxu0 0
    %791 = vmatprep.subr.bf16.mxu0 0
    %792 = vmatpush1.bf16.msra.mxu0 0
    %793 = vmatprep.subr.bf16.mxu0 0
    %794 = vmatpush1.bf16.msra.mxu0 0
    %795 = vmatprep.subr.bf16.mxu0 0
    %796 = vmatpush1.bf16.msra.mxu0 0
    %797 = vmatprep.subr.bf16.mxu0 0
    %798 = vmatpush1.bf16.msra.mxu0 0
    %799 = vmatprep.subr.bf16.mxu0 0
    %800 = vmatpush1.bf16.msra.mxu0 0
    %801 = vmatprep.subr.bf16.mxu0 0
    %802 = vmatpush1.bf16.msra.mxu0 0
    %803 = vmatprep.subr.bf16.mxu0 0
    %804 = vmatpush1.bf16.msra.mxu0 0
    %805 = vmatprep.subr.bf16.mxu0 0
    %806 = vmatpush1.bf16.msra.mxu0 0
    %807 = vmatprep.subr.bf16.mxu0 0
    %808 = vmatpush1.bf16.msra.mxu0 0
    %809 = vmatprep.subr.bf16.mxu0 0
    %810 = vmatpush1.bf16.msra.mxu0 0
    %811 = vmatprep.subr.bf16.mxu0 0
    %812 = vmatpush1.bf16.msra.mxu0 0
    %813 = vmatprep.subr.bf16.mxu0 0
    %814 = vmatpush1.bf16.msra.mxu0 0
    %815 = vmatprep.subr.bf16.mxu0 0
    %816 = vmatpush1.bf16.msra.mxu0 0
    %817 = vmatprep.mubr.bf16.mxu0 0
    %818 = vmatmul.mubr.bf16.gmra.mrb[0].mxu0 %v780
    %v819 = vpop.f32.mrb[0].mxu0
    %v820 = vadd.f32 0.0, %v819
    %v821 = vpop.f32.mrb[0].mxu0
    %v822 = vpop.f32.mrb[0].mxu0
    %v823 = vadd.f32 0.0, %v822
    %v824 = vpop.f32.mrb[0].mxu0
    %825 = vdwg.mxu0
    %826 = vrot.lane.b32.xlu0 %v382, 88
    %v827 = vpop.permute.xlu0 %826
    %v829 = vsel %vm383, %v776, 0
    %v832 = vsel %vm530, %v827, 0
    %834 = vmatprep.subr.bf16.mxu0 0
    %835 = vmatpush1.bf16.msra.mxu0 %v832
    %836 = vmatprep.subr.bf16.mxu0 0
    %837 = vmatpush1.bf16.msra.mxu0 0
    %838 = vmatprep.subr.bf16.mxu0 0
    %839 = vmatpush1.bf16.msra.mxu0 0
    %840 = vmatprep.subr.bf16.mxu0 0
    %841 = vmatpush1.bf16.msra.mxu0 0
    %842 = vmatprep.subr.bf16.mxu0 0
    %843 = vmatpush1.bf16.msra.mxu0 0
    %844 = vmatprep.subr.bf16.mxu0 0
    %845 = vmatpush1.bf16.msra.mxu0 0
    %846 = vmatprep.subr.bf16.mxu0 0
    %847 = vmatpush1.bf16.msra.mxu0 0
    %848 = vmatprep.subr.bf16.mxu0 0
    %849 = vmatpush1.bf16.msra.mxu0 0
    %850 = vmatprep.subr.bf16.mxu0 0
    %851 = vmatpush1.bf16.msra.mxu0 0
    %852 = vmatprep.subr.bf16.mxu0 0
    %853 = vmatpush1.bf16.msra.mxu0 0
    %854 = vmatprep.subr.bf16.mxu0 0
    %855 = vmatpush1.bf16.msra.mxu0 0
    %856 = vmatprep.subr.bf16.mxu0 0
    %857 = vmatpush1.bf16.msra.mxu0 0
    %858 = vmatprep.subr.bf16.mxu0 0
    %859 = vmatpush1.bf16.msra.mxu0 0
    %860 = vmatprep.subr.bf16.mxu0 0
    %861 = vmatpush1.bf16.msra.mxu0 0
    %862 = vmatprep.subr.bf16.mxu0 0
    %863 = vmatpush1.bf16.msra.mxu0 0
    %864 = vmatprep.subr.bf16.mxu0 0
    %865 = vmatpush1.bf16.msra.mxu0 0
    %866 = vmatprep.mubr.bf16.mxu0 0
    %867 = vmatmul.mubr.bf16.gmra.mrb[0].mxu0 %v829
    %v868 = vpop.f32.mrb[0].mxu0
    %v869 = vadd.f32 0.0, %v868
    %v870 = vpop.f32.mrb[0].mxu0
    %v871 = vpop.f32.mrb[0].mxu0
    %v872 = vadd.f32 0.0, %v871
    %v873 = vpop.f32.mrb[0].mxu0
    %874 = vdwg.mxu0
    %875 = vrot.lane.b32.xlu0 %v377, 112
    %v876 = vpop.permute.xlu0 %875
    %877 = vrot.lane.b32.xlu0 %v379, 112
    %v878 = vpop.permute.xlu0 %877
    %v880 = vsel %vm383, %v876, 0
    %v883 = vsel %vm383, %v878, 0
    %885 = vmatprep.subr.bf16.mxu0 0
    %886 = vmatpush1.bf16.xpose.msra.mxu0 %v883
    %887 = vmatprep.subr.bf16.mxu0 0
    %888 = vmatpush1.bf16.xpose.msra.mxu0 0
    %889 = vmatprep.subr.bf16.mxu0 0
    %890 = vmatpush1.bf16.xpose.msra.mxu0 0
    %891 = vmatprep.subr.bf16.mxu0 0
    %892 = vmatpush1.bf16.xpose.msra.mxu0 0
    %893 = vmatprep.subr.bf16.mxu0 0
    %894 = vmatpush1.bf16.xpose.msra.mxu0 0
    %895 = vmatprep.subr.bf16.mxu0 0
    %896 = vmatpush1.bf16.xpose.msra.mxu0 0
    %897 = vmatprep.subr.bf16.mxu0 0
    %898 = vmatpush1.bf16.xpose.msra.mxu0 0
    %899 = vmatprep.subr.bf16.mxu0 0
    %900 = vmatpush1.bf16.xpose.msra.mxu0 0
    %901 = vmatprep.subr.bf16.mxu0 0
    %902 = vmatpush1.bf16.xpose.msra.mxu0 0
    %903 = vmatprep.subr.bf16.mxu0 0
    %904 = vmatpush1.bf16.xpose.msra.mxu0 0
    %905 = vmatprep.subr.bf16.mxu0 0
    %906 = vmatpush1.bf16.xpose.msra.mxu0 0
    %907 = vmatprep.subr.bf16.mxu0 0
    %908 = vmatpush1.bf16.xpose.msra.mxu0 0
    %909 = vmatprep.subr.bf16.mxu0 0
    %910 = vmatpush1.bf16.xpose.msra.mxu0 0
    %911 = vmatprep.subr.bf16.mxu0 0
    %912 = vmatpush1.bf16.xpose.msra.mxu0 0
    %913 = vmatprep.subr.bf16.mxu0 0
    %914 = vmatpush1.bf16.xpose.msra.mxu0 0
    %915 = vmatprep.subr.bf16.mxu0 0
    %916 = vmatpush1.bf16.xpose.msra.mxu0 0
    %917 = vmatprep.mubr.bf16.mxu0 0
    %918 = vmatmul.mubr.bf16.gmra.mrb[0].mxu0 %v880
    %v919 = vpop.f32.mrb[0].mxu0
    %v920 = vadd.f32 0.0, %v919
    %v921 = vpop.f32.mrb[0].mxu0
    %v922 = vpop.f32.mrb[0].mxu0
    %v923 = vadd.f32 0.0, %v922
    %v924 = vpop.f32.mrb[0].mxu0
    %925 = vdwg.mxu0
    %926 = vrot.lane.b32.xlu0 %v378, 112
    %v927 = vpop.permute.xlu0 %926
    %928 = vrot.lane.b32.xlu0 %v380, 112
    %v929 = vpop.permute.xlu0 %928
    %v931 = vsel %vm383, %v927, 0
    %v934 = vsel %vm383, %v929, 0
    %936 = vmatprep.subr.bf16.mxu0 0
    %937 = vmatpush1.bf16.xpose.msra.mxu0 %v934
    %938 = vmatprep.subr.bf16.mxu0 0
    %939 = vmatpush1.bf16.xpose.msra.mxu0 0
    %940 = vmatprep.subr.bf16.mxu0 0
    %941 = vmatpush1.bf16.xpose.msra.mxu0 0
    %942 = vmatprep.subr.bf16.mxu0 0
    %943 = vmatpush1.bf16.xpose.msra.mxu0 0
    %944 = vmatprep.subr.bf16.mxu0 0
    %945 = vmatpush1.bf16.xpose.msra.mxu0 0
    %946 = vmatprep.subr.bf16.mxu0 0
    %947 = vmatpush1.bf16.xpose.msra.mxu0 0
    %948 = vmatprep.subr.bf16.mxu0 0
    %949 = vmatpush1.bf16.xpose.msra.mxu0 0
    %950 = vmatprep.subr.bf16.mxu0 0
    %951 = vmatpush1.bf16.xpose.msra.mxu0 0
    %952 = vmatprep.subr.bf16.mxu0 0
    %953 = vmatpush1.bf16.xpose.msra.mxu0 0
    %954 = vmatprep.subr.bf16.mxu0 0
    %955 = vmatpush1.bf16.xpose.msra.mxu0 0
    %956 = vmatprep.subr.bf16.mxu0 0
    %957 = vmatpush1.bf16.xpose.msra.mxu0 0
    %958 = vmatprep.subr.bf16.mxu0 0
    %959 = vmatpush1.bf16.xpose.msra.mxu0 0
    %960 = vmatprep.subr.bf16.mxu0 0
    %961 = vmatpush1.bf16.xpose.msra.mxu0 0
    %962 = vmatprep.subr.bf16.mxu0 0
    %963 = vmatpush1.bf16.xpose.msra.mxu0 0
    %964 = vmatprep.subr.bf16.mxu0 0
    %965 = vmatpush1.bf16.xpose.msra.mxu0 0
    %966 = vmatprep.subr.bf16.mxu0 0
    %967 = vmatpush1.bf16.xpose.msra.mxu0 0
    %968 = vmatprep.mubr.bf16.mxu0 0
    %969 = vmatmul.mubr.bf16.gmra.mrb[0].mxu0 %v931
    %v970 = vpop.f32.mrb[0].mxu0
    %v971 = vadd.f32 0.0, %v970
    %v972 = vpop.f32.mrb[0].mxu0
    %v973 = vpop.f32.mrb[0].mxu0
    %v974 = vadd.f32 0.0, %v973
    %v975 = vpop.f32.mrb[0].mxu0
    %976 = vdwg.mxu0
    %v977 = vsel %vm383, %v920, -inf
    %978 = vmax.xlane.f32.xlu0 %v977
    %v979 = vpop.xlane.xlu0 %978
    %v980 = vsel %vm383, %v923, -inf
    %981 = vmax.xlane.f32.xlu0 %v980
    %v982 = vpop.xlane.xlu0 %981
    %v983 = vsel %vm383, %v971, -inf
    %984 = vmax.xlane.f32.xlu0 %v983
    %v985 = vpop.xlane.xlu0 %984
    %v986 = vsel %vm383, %v974, -inf
    %987 = vmax.xlane.f32.xlu0 %v986
    %v988 = vpop.xlane.xlu0 %987
    %v989 = vsub.f32 %v920, %v979
    %v990 = vsub.f32 %v923, %v982
    %v991 = vsub.f32 %v971, %v985
    %v992 = vsub.f32 %v974, %v988
    %v993 = vmul.f32 %v989, 1.442695
    %v994 = vpow.pop %v993
    %v995 = vmul.f32 %v990, 1.442695
    %v996 = vpow.pop %v995
    %v997 = vmul.f32 %v991, 1.442695
    %v998 = vpow.pop %v997
    %v999 = vmul.f32 %v992, 1.442695
    %v1000 = vpow.pop %v999
    %v1001 = vsel %vm383, %v994, 0.0
    %1002 = vadd.xlane.f32.xlu0 %v1001
    %v1003 = vpop.xlane.xlu0 %1002
    %v1004 = vsel %vm383, %v996, 0.0
    %1005 = vadd.xlane.f32.xlu0 %v1004
    %v1006 = vpop.xlane.xlu0 %1005
    %v1007 = vsel %vm383, %v998, 0.0
    %1008 = vadd.xlane.f32.xlu0 %v1007
    %v1009 = vpop.xlane.xlu0 %1008
    %v1010 = vsel %vm383, %v1000, 0.0
    %1011 = vadd.xlane.f32.xlu0 %v1010
    %v1012 = vpop.xlane.xlu0 %1011
    %v1013 = vrcp.pop %v1003
    %v1014 = vrcp.pop %v1006
    %v1015 = vrcp.pop %v1009
    %v1016 = vrcp.pop %v1012
    %v1017 = vmul.f32 %v994, %v1013
    %v1018 = vmul.f32 %v996, %v1014
    %v1019 = vmul.f32 %v998, %v1015
    %v1020 = vmul.f32 %v1000, %v1016
    %v1021 = vpack.c.bf16 %v1018, %v1017
    %v1022 = vpack.c.bf16 %v1020, %v1019
    %1023 = vrot.lane.b32.xlu0 %v381, 80
    %v1024 = vpop.permute.xlu0 %1023
    %v1026 = vsel %vm383, %v1021, 0
    %v1029 = vsel %vm530, %v1024, 0
    %1031 = vmatprep.subr.bf16.mxu0 0
    %1032 = vmatpush1.bf16.msra.mxu0 %v1029
    %1033 = vmatprep.subr.bf16.mxu0 0
    %1034 = vmatpush1.bf16.msra.mxu0 0
    %1035 = vmatprep.subr.bf16.mxu0 0
    %1036 = vmatpush1.bf16.msra.mxu0 0
    %1037 = vmatprep.subr.bf16.mxu0 0
    %1038 = vmatpush1.bf16.msra.mxu0 0
    %1039 = vmatprep.subr.bf16.mxu0 0
    %1040 = vmatpush1.bf16.msra.mxu0 0
    %1041 = vmatprep.subr.bf16.mxu0 0
    %1042 = vmatpush1.bf16.msra.mxu0 0
    %1043 = vmatprep.subr.bf16.mxu0 0
    %1044 = vmatpush1.bf16.msra.mxu0 0
    %1045 = vmatprep.subr.bf16.mxu0 0
    %1046 = vmatpush1.bf16.msra.mxu0 0
    %1047 = vmatprep.subr.bf16.mxu0 0
    %1048 = vmatpush1.bf16.msra.mxu0 0
    %1049 = vmatprep.subr.bf16.mxu0 0
    %1050 = vmatpush1.bf16.msra.mxu0 0
    %1051 = vmatprep.subr.bf16.mxu0 0
    %1052 = vmatpush1.bf16.msra.mxu0 0
    %1053 = vmatprep.subr.bf16.mxu0 0
    %1054 = vmatpush1.bf16.msra.mxu0 0
    %1055 = vmatprep.subr.bf16.mxu0 0
    %1056 = vmatpush1.bf16.msra.mxu0 0
    %1057 = vmatprep.subr.bf16.mxu0 0
    %1058 = vmatpush1.bf16.msra.mxu0 0
    %1059 = vmatprep.subr.bf16.mxu0 0
    %1060 = vmatpush1.bf16.msra.mxu0 0
    %1061 = vmatprep.subr.bf16.mxu0 0
    %1062 = vmatpush1.bf16.msra.mxu0 0
    %1063 = vmatprep.mubr.bf16.mxu0 0
    %1064 = vmatmul.mubr.bf16.gmra.mrb[0].mxu0 %v1026
    %v1065 = vpop.f32.mrb[0].mxu0
    %v1066 = vadd.f32 0.0, %v1065
    %v1067 = vpop.f32.mrb[0].mxu0
    %v1068 = vpop.f32.mrb[0].mxu0
    %v1069 = vadd.f32 0.0, %v1068
    %v1070 = vpop.f32.mrb[0].mxu0
    %1071 = vdwg.mxu0
    %1072 = vrot.lane.b32.xlu0 %v382, 80
    %v1073 = vpop.permute.xlu0 %1072
    %v1075 = vsel %vm383, %v1022, 0
    %v1078 = vsel %vm530, %v1073, 0
    %1080 = vmatprep.subr.bf16.mxu0 0
    %1081 = vmatpush1.bf16.msra.mxu0 %v1078
    %1082 = vmatprep.subr.bf16.mxu0 0
    %1083 = vmatpush1.bf16.msra.mxu0 0
    %1084 = vmatprep.subr.bf16.mxu0 0
    %1085 = vmatpush1.bf16.msra.mxu0 0
    %1086 = vmatprep.subr.bf16.mxu0 0
    %1087 = vmatpush1.bf16.msra.mxu0 0
    %1088 = vmatprep.subr.bf16.mxu0 0
    %1089 = vmatpush1.bf16.msra.mxu0 0
    %1090 = vmatprep.subr.bf16.mxu0 0
    %1091 = vmatpush1.bf16.msra.mxu0 0
    %1092 = vmatprep.subr.bf16.mxu0 0
    %1093 = vmatpush1.bf16.msra.mxu0 0
    %1094 = vmatprep.subr.bf16.mxu0 0
    %1095 = vmatpush1.bf16.msra.mxu0 0
    %1096 = vmatprep.subr.bf16.mxu0 0
    %1097 = vmatpush1.bf16.msra.mxu0 0
    %1098 = vmatprep.subr.bf16.mxu0 0
    %1099 = vmatpush1.bf16.msra.mxu0 0
    %1100 = vmatprep.subr.bf16.mxu0 0
    %1101 = vmatpush1.bf16.msra.mxu0 0
    %1102 = vmatprep.subr.bf16.mxu0 0
    %1103 = vmatpush1.bf16.msra.mxu0 0
    %1104 = vmatprep.subr.bf16.mxu0 0
    %1105 = vmatpush1.bf16.msra.mxu0 0
    %1106 = vmatprep.subr.bf16.mxu0 0
    %1107 = vmatpush1.bf16.msra.mxu0 0
    %1108 = vmatprep.subr.bf16.mxu0 0
    %1109 = vmatpush1.bf16.msra.mxu0 0
    %1110 = vmatprep.subr.bf16.mxu0 0
    %1111 = vmatpush1.bf16.msra.mxu0 0
    %1112 = vmatprep.mubr.bf16.mxu0 0
    %1113 = vmatmul.mubr.bf16.gmra.mrb[0].mxu0 %v1075
    %v1114 = vpop.f32.mrb[0].mxu0
    %v1115 = vadd.f32 0.0, %v1114
    %v1116 = vpop.f32.mrb[0].mxu0
    %v1117 = vpop.f32.mrb[0].mxu0
    %v1118 = vadd.f32 0.0, %v1117
    %v1119 = vpop.f32.mrb[0].mxu0
    %1120 = vdwg.mxu0
    %1121 = vrot.lane.b32.xlu0 %v377, 104
    %v1122 = vpop.permute.xlu0 %1121
    %1123 = vrot.lane.b32.xlu0 %v379, 104
    %v1124 = vpop.permute.xlu0 %1123
    %v1126 = vsel %vm383, %v1122, 0
    %v1129 = vsel %vm383, %v1124, 0
    %1131 = vmatprep.subr.bf16.mxu0 0
    %1132 = vmatpush1.bf16.xpose.msra.mxu0 %v1129
    %1133 = vmatprep.subr.bf16.mxu0 0
    %1134 = vmatpush1.bf16.xpose.msra.mxu0 0
    %1135 = vmatprep.subr.bf16.mxu0 0
    %1136 = vmatpush1.bf16.xpose.msra.mxu0 0
    %1137 = vmatprep.subr.bf16.mxu0 0
    %1138 = vmatpush1.bf16.xpose.msra.mxu0 0
    %1139 = vmatprep.subr.bf16.mxu0 0
    %1140 = vmatpush1.bf16.xpose.msra.mxu0 0
    %1141 = vmatprep.subr.bf16.mxu0 0
    %1142 = vmatpush1.bf16.xpose.msra.mxu0 0
    %1143 = vmatprep.subr.bf16.mxu0 0
    %1144 = vmatpush1.bf16.xpose.msra.mxu0 0
    %1145 = vmatprep.subr.bf16.mxu0 0
    %1146 = vmatpush1.bf16.xpose.msra.mxu0 0
    %1147 = vmatprep.subr.bf16.mxu0 0
    %1148 = vmatpush1.bf16.xpose.msra.mxu0 0
    %1149 = vmatprep.subr.bf16.mxu0 0
    %1150 = vmatpush1.bf16.xpose.msra.mxu0 0
    %1151 = vmatprep.subr.bf16.mxu0 0
    %1152 = vmatpush1.bf16.xpose.msra.mxu0 0
    %1153 = vmatprep.subr.bf16.mxu0 0
    %1154 = vmatpush1.bf16.xpose.msra.mxu0 0
    %1155 = vmatprep.subr.bf16.mxu0 0
    %1156 = vmatpush1.bf16.xpose.msra.mxu0 0
    %1157 = vmatprep.subr.bf16.mxu0 0
    %1158 = vmatpush1.bf16.xpose.msra.mxu0 0
    %1159 = vmatprep.subr.bf16.mxu0 0
    %1160 = vmatpush1.bf16.xpose.msra.mxu0 0
    %1161 = vmatprep.subr.bf16.mxu0 0
    %1162 = vmatpush1.bf16.xpose.msra.mxu0 0
    %1163 = vmatprep.mubr.bf16.mxu0 0
    %1164 = vmatmul.mubr.bf16.gmra.mrb[0].mxu0 %v1126
    %v1165 = vpop.f32.mrb[0].mxu0
    %v1166 = vadd.f32 0.0, %v1165
    %v1167 = vpop.f32.mrb[0].mxu0
    %v1168 = vpop.f32.mrb[0].mxu0
    %v1169 = vadd.f32 0.0, %v1168
    %v1170 = vpop.f32.mrb[0].mxu0
    %1171 = vdwg.mxu0
    %1172 = vrot.lane.b32.xlu0 %v378, 104
    %v1173 = vpop.permute.xlu0 %1172
    %1174 = vrot.lane.b32.xlu0 %v380, 104
    %v1175 = vpop.permute.xlu0 %1174
    %v1177 = vsel %vm383, %v1173, 0
    %v1180 = vsel %vm383, %v1175, 0
    %1182 = vmatprep.subr.bf16.mxu0 0
    %1183 = vmatpush1.bf16.xpose.msra.mxu0 %v1180
    %1184 = vmatprep.subr.bf16.mxu0 0
    %1185 = vmatpush1.bf16.xpose.msra.mxu0 0
    %1186 = vmatprep.subr.bf16.mxu0 0
    %1187 = vmatpush1.bf16.xpose.msra.mxu0 0
    %1188 = vmatprep.subr.bf16.mxu0 0
    %1189 = vmatpush1.bf16.xpose.msra.mxu0 0
    %1190 = vmatprep.subr.bf16.mxu0 0
    %1191 = vmatpush1.bf16.xpose.msra.mxu0 0
    %1192 = vmatprep.subr.bf16.mxu0 0
    %1193 = vmatpush1.bf16.xpose.msra.mxu0 0
    %1194 = vmatprep.subr.bf16.mxu0 0
    %1195 = vmatpush1.bf16.xpose.msra.mxu0 0
    %1196 = vmatprep.subr.bf16.mxu0 0
    %1197 = vmatpush1.bf16.xpose.msra.mxu0 0
    %1198 = vmatprep.subr.bf16.mxu0 0
    %1199 = vmatpush1.bf16.xpose.msra.mxu0 0
    %1200 = vmatprep.subr.bf16.mxu0 0
    %1201 = vmatpush1.bf16.xpose.msra.mxu0 0
    %1202 = vmatprep.subr.bf16.mxu0 0
    %1203 = vmatpush1.bf16.xpose.msra.mxu0 0
    %1204 = vmatprep.subr.bf16.mxu0 0
    %1205 = vmatpush1.bf16.xpose.msra.mxu0 0
    %1206 = vmatprep.subr.bf16.mxu0 0
    %1207 = vmatpush1.bf16.xpose.msra.mxu0 0
    %1208 = vmatprep.subr.bf16.mxu0 0
    %1209 = vmatpush1.bf16.xpose.msra.mxu0 0
    %1210 = vmatprep.subr.bf16.mxu0 0
    %1211 = vmatpush1.bf16.xpose.msra.mxu0 0
    %1212 = vmatprep.subr.bf16.mxu0 0
    %1213 = vmatpush1.bf16.xpose.msra.mxu0 0
    %1214 = vmatprep.mubr.bf16.mxu0 0
    %1215 = vmatmul.mubr.bf16.gmra.mrb[0].mxu0 %v1177
    %v1216 = vpop.f32.mrb[0].mxu0
    %v1217 = vadd.f32 0.0, %v1216
    %v1218 = vpop.f32.mrb[0].mxu0
    %v1219 = vpop.f32.mrb[0].mxu0
    %v1220 = vadd.f32 0.0, %v1219
    %v1221 = vpop.f32.mrb[0].mxu0
    %1222 = vdwg.mxu0
    %v1223 = vsel %vm383, %v1166, -inf
    %1224 = vmax.xlane.f32.xlu0 %v1223
    %v1225 = vpop.xlane.xlu0 %1224
    %v1226 = vsel %vm383, %v1169, -inf
    %1227 = vmax.xlane.f32.xlu0 %v1226
    %v1228 = vpop.xlane.xlu0 %1227
    %v1229 = vsel %vm383, %v1217, -inf
    %1230 = vmax.xlane.f32.xlu0 %v1229
    %v1231 = vpop.xlane.xlu0 %1230
    %v1232 = vsel %vm383, %v1220, -inf
    %1233 = vmax.xlane.f32.xlu0 %v1232
    %v1234 = vpop.xlane.xlu0 %1233
    %v1235 = vsub.f32 %v1166, %v1225
    %v1236 = vsub.f32 %v1169, %v1228
    %v1237 = vsub.f32 %v1217, %v1231
    %v1238 = vsub.f32 %v1220, %v1234
    %v1239 = vmul.f32 %v1235, 1.442695
    %v1240 = vpow.pop %v1239
    %v1241 = vmul.f32 %v1236, 1.442695
    %v1242 = vpow.pop %v1241
    %v1243 = vmul.f32 %v1237, 1.442695
    %v1244 = vpow.pop %v1243
    %v1245 = vmul.f32 %v1238, 1.442695
    %v1246 = vpow.pop %v1245
    %v1247 = vsel %vm383, %v1240, 0.0
    %1248 = vadd.xlane.f32.xlu0 %v1247
    %v1249 = vpop.xlane.xlu0 %1248
    %v1250 = vsel %vm383, %v1242, 0.0
    %1251 = vadd.xlane.f32.xlu0 %v1250
    %v1252 = vpop.xlane.xlu0 %1251
    %v1253 = vsel %vm383, %v1244, 0.0
    %1254 = vadd.xlane.f32.xlu0 %v1253
    %v1255 = vpop.xlane.xlu0 %1254
    %v1256 = vsel %vm383, %v1246, 0.0
    %1257 = vadd.xlane.f32.xlu0 %v1256
    %v1258 = vpop.xlane.xlu0 %1257
    %v1259 = vrcp.pop %v1249
    %v1260 = vrcp.pop %v1252
    %v1261 = vrcp.pop %v1255
    %v1262 = vrcp.pop %v1258
    %v1263 = vmul.f32 %v1240, %v1259
    %v1264 = vmul.f32 %v1242, %v1260
    %v1265 = vmul.f32 %v1244, %v1261
    %v1266 = vmul.f32 %v1246, %v1262
    %v1267 = vpack.c.bf16 %v1264, %v1263
    %v1268 = vpack.c.bf16 %v1266, %v1265
    %1269 = vrot.lane.b32.xlu0 %v381, 72
    %v1270 = vpop.permute.xlu0 %1269
    %v1272 = vsel %vm383, %v1267, 0
    %v1275 = vsel %vm530, %v1270, 0
    %1277 = vmatprep.subr.bf16.mxu0 0
    %1278 = vmatpush1.bf16.msra.mxu0 %v1275
    %1279 = vmatprep.subr.bf16.mxu0 0
    %1280 = vmatpush1.bf16.msra.mxu0 0
    %1281 = vmatprep.subr.bf16.mxu0 0
    %1282 = vmatpush1.bf16.msra.mxu0 0
    %1283 = vmatprep.subr.bf16.mxu0 0
    %1284 = vmatpush1.bf16.msra.mxu0 0
    %1285 = vmatprep.subr.bf16.mxu0 0
    %1286 = vmatpush1.bf16.msra.mxu0 0
    %1287 = vmatprep.subr.bf16.mxu0 0
    %1288 = vmatpush1.bf16.msra.mxu0 0
    %1289 = vmatprep.subr.bf16.mxu0 0
    %1290 = vmatpush1.bf16.msra.mxu0 0
    %1291 = vmatprep.subr.bf16.mxu0 0
    %1292 = vmatpush1.bf16.msra.mxu0 0
    %1293 = vmatprep.subr.bf16.mxu0 0
    %1294 = vmatpush1.bf16.msra.mxu0 0
    %1295 = vmatprep.subr.bf16.mxu0 0
    %1296 = vmatpush1.bf16.msra.mxu0 0
    %1297 = vmatprep.subr.bf16.mxu0 0
    %1298 = vmatpush1.bf16.msra.mxu0 0
    %1299 = vmatprep.subr.bf16.mxu0 0
    %1300 = vmatpush1.bf16.msra.mxu0 0
    %1301 = vmatprep.subr.bf16.mxu0 0
    %1302 = vmatpush1.bf16.msra.mxu0 0
    %1303 = vmatprep.subr.bf16.mxu0 0
    %1304 = vmatpush1.bf16.msra.mxu0 0
    %1305 = vmatprep.subr.bf16.mxu0 0
    %1306 = vmatpush1.bf16.msra.mxu0 0
    %1307 = vmatprep.subr.bf16.mxu0 0
    %1308 = vmatpush1.bf16.msra.mxu0 0
    %1309 = vmatprep.mubr.bf16.mxu0 0
    %1310 = vmatmul.mubr.bf16.gmra.mrb[0].mxu0 %v1272
    %v1311 = vpop.f32.mrb[0].mxu0
    %v1312 = vadd.f32 0.0, %v1311
    %v1313 = vpop.f32.mrb[0].mxu0
    %v1314 = vpop.f32.mrb[0].mxu0
    %v1315 = vadd.f32 0.0, %v1314
    %v1316 = vpop.f32.mrb[0].mxu0
    %1317 = vdwg.mxu0
    %1318 = vrot.lane.b32.xlu0 %v382, 72
    %v1319 = vpop.permute.xlu0 %1318
    %v1321 = vsel %vm383, %v1268, 0
    %v1324 = vsel %vm530, %v1319, 0
    %1326 = vmatprep.subr.bf16.mxu0 0
    %1327 = vmatpush1.bf16.msra.mxu0 %v1324
    %1328 = vmatprep.subr.bf16.mxu0 0
    %1329 = vmatpush1.bf16.msra.mxu0 0
    %1330 = vmatprep.subr.bf16.mxu0 0
    %1331 = vmatpush1.bf16.msra.mxu0 0
    %1332 = vmatprep.subr.bf16.mxu0 0
    %1333 = vmatpush1.bf16.msra.mxu0 0
    %1334 = vmatprep.subr.bf16.mxu0 0
    %1335 = vmatpush1.bf16.msra.mxu0 0
    %1336 = vmatprep.subr.bf16.mxu0 0
    %1337 = vmatpush1.bf16.msra.mxu0 0
    %1338 = vmatprep.subr.bf16.mxu0 0
    %1339 = vmatpush1.bf16.msra.mxu0 0
    %1340 = vmatprep.subr.bf16.mxu0 0
    %1341 = vmatpush1.bf16.msra.mxu0 0
    %1342 = vmatprep.subr.bf16.mxu0 0
    %1343 = vmatpush1.bf16.msra.mxu0 0
    %1344 = vmatprep.subr.bf16.mxu0 0
    %1345 = vmatpush1.bf16.msra.mxu0 0
    %1346 = vmatprep.subr.bf16.mxu0 0
    %1347 = vmatpush1.bf16.msra.mxu0 0
    %1348 = vmatprep.subr.bf16.mxu0 0
    %1349 = vmatpush1.bf16.msra.mxu0 0
    %1350 = vmatprep.subr.bf16.mxu0 0
    %1351 = vmatpush1.bf16.msra.mxu0 0
    %1352 = vmatprep.subr.bf16.mxu0 0
    %1353 = vmatpush1.bf16.msra.mxu0 0
    %1354 = vmatprep.subr.bf16.mxu0 0
    %1355 = vmatpush1.bf16.msra.mxu0 0
    %1356 = vmatprep.subr.bf16.mxu0 0
    %1357 = vmatpush1.bf16.msra.mxu0 0
    %1358 = vmatprep.mubr.bf16.mxu0 0
    %1359 = vmatmul.mubr.bf16.gmra.mrb[0].mxu0 %v1321
    %v1360 = vpop.f32.mrb[0].mxu0
    %v1361 = vadd.f32 0.0, %v1360
    %v1362 = vpop.f32.mrb[0].mxu0
    %v1363 = vpop.f32.mrb[0].mxu0
    %v1364 = vadd.f32 0.0, %v1363
    %v1365 = vpop.f32.mrb[0].mxu0
    %1366 = vdwg.mxu0
    %1371 = vrot.lane.b32.xlu0 %v820, 8
    %v1372 = vpop.permute.xlu0 %1371
    %1373 = vrot.lane.b32.xlu0 %v823, 8
    %v1374 = vpop.permute.xlu0 %1373
    %1375 = vrot.lane.b32.xlu0 %v869, 8
    %v1376 = vpop.permute.xlu0 %1375
    %1377 = vrot.lane.b32.xlu0 %v872, 8
    %v1378 = vpop.permute.xlu0 %1377
    %1387 = vrot.lane.b32.xlu0 %v1066, 16
    %v1388 = vpop.permute.xlu0 %1387
    %1389 = vrot.lane.b32.xlu0 %v1069, 16
    %v1390 = vpop.permute.xlu0 %1389
    %1391 = vrot.lane.b32.xlu0 %v1115, 16
    %v1392 = vpop.permute.xlu0 %1391
    %1393 = vrot.lane.b32.xlu0 %v1118, 16
    %v1394 = vpop.permute.xlu0 %1393
    %1403 = vrot.lane.b32.xlu0 %v1312, 24
    %v1404 = vpop.permute.xlu0 %1403
    %1405 = vrot.lane.b32.xlu0 %v1315, 24
    %v1406 = vpop.permute.xlu0 %1405
    %1407 = vrot.lane.b32.xlu0 %v1361, 24
    %v1408 = vpop.permute.xlu0 %1407
    %1409 = vrot.lane.b32.xlu0 %v1364, 24
    %v1410 = vpop.permute.xlu0 %1409
    %v1415 = vsel %vm383, %v569, %v1372
    %v1416 = vsel %vm383, %v572, %v1374
    %v1417 = vsel %vm383, %v619, %v1376
    %v1418 = vsel %vm383, %v622, %v1378
    %vm1419 = vcmask 130048
    %v1420 = vsel %vm1419, %v1415, %v1388
    %v1421 = vsel %vm1419, %v1416, %v1390
    %v1422 = vsel %vm1419, %v1417, %v1392
    %v1423 = vsel %vm1419, %v1418, %v1394
    %vm1424 = vcmask 195584
    %v1425 = vsel %vm1424, %v1420, %v1404
    %v1426 = vsel %vm1424, %v1421, %v1406
    %v1427 = vsel %vm1424, %v1422, %v1408
    %v1428 = vsel %vm1424, %v1423, %v1410
    %v1429 = vpack.c.bf16 %v1426, %v1425
    %v1430 = vpack.c.bf16 %v1428, %v1427
    %v1431 = vld [vmem:[#allocation7] sm:$0xf]
    %v1432 = vld [vmem:[#allocation7 + $0x4] sm:$0xf]
    %v1433 = vld [vmem:[#allocation7 + $0x8] sm:$0xf]
    %v1434 = vld [vmem:[#allocation7 + $0xc] sm:$0xf]
    %v1435 = vlaneseq
    %v1436 = vshrl.u32 %v1435, 7
    %v1437 = vsub.s32 1, %v1436
    %v1438 = vrot.slane %v109, %v1437
    %v1443 = vunpack.c.l.b16 %v1431
    %v1444 = vunpack.c.l.b16 %v1432
    %v1445 = vunpack.c.l.b16 %v1433
    %v1446 = vunpack.c.l.b16 %v1434
    %v1447 = vpack.c.b16 %v1444, %v1443
    %v1448 = vpack.c.b16 %v1446, %v1445
    %v1452 = vsel %vm111, %v1429, 0
    %v1455 = vsel %vm111, %v1430, 0
    %1457 = vmatprep.subr.bf16.mxu0 0
    %1458 = vmatpush1.bf16.msra.mxu0 %v1447
    %1459 = vmatprep.subr.bf16.mxu0 0
    %1460 = vmatpush1.bf16.msra.mxu0 %v1448
    %1461 = vmatprep.subr.bf16.mxu0 0
    %1462 = vmatpush1.bf16.msra.mxu0 0
    %1463 = vmatprep.subr.bf16.mxu0 0
    %1464 = vmatpush1.bf16.msra.mxu0 0
    %1465 = vmatprep.subr.bf16.mxu0 0
    %1466 = vmatpush1.bf16.msra.mxu0 0
    %1467 = vmatprep.subr.bf16.mxu0 0
    %1468 = vmatpush1.bf16.msra.mxu0 0
    %1469 = vmatprep.subr.bf16.mxu0 0
    %1470 = vmatpush1.bf16.msra.mxu0 0
    %1471 = vmatprep.subr.bf16.mxu0 0
    %1472 = vmatpush1.bf16.msra.mxu0 0
    %1473 = vmatprep.subr.bf16.mxu0 0
    %1474 = vmatpush1.bf16.msra.mxu0 0
    %1475 = vmatprep.subr.bf16.mxu0 0
    %1476 = vmatpush1.bf16.msra.mxu0 0
    %1477 = vmatprep.subr.bf16.mxu0 0
    %1478 = vmatpush1.bf16.msra.mxu0 0
    %1479 = vmatprep.subr.bf16.mxu0 0
    %1480 = vmatpush1.bf16.msra.mxu0 0
    %1481 = vmatprep.subr.bf16.mxu0 0
    %1482 = vmatpush1.bf16.msra.mxu0 0
    %1483 = vmatprep.subr.bf16.mxu0 0
    %1484 = vmatpush1.bf16.msra.mxu0 0
    %1485 = vmatprep.subr.bf16.mxu0 0
    %1486 = vmatpush1.bf16.msra.mxu0 0
    %1487 = vmatprep.subr.bf16.mxu0 0
    %1488 = vmatpush1.bf16.msra.mxu0 0
    %1489 = vmatprep.mubr.bf16.mxu0 0
    %1490 = vmatmul.mubr.bf16.gmra.mrb[0].mxu0 %v1452
    %v1491 = vpop.f32.mrb[0].mxu0
    %v1492 = vadd.f32 %v1438, %v1491
    %v1493 = vpop.f32.mrb[0].mxu0
    %v1494 = vpop.f32.mrb[0].mxu0
    %v1495 = vadd.f32 %v1438, %v1494
    %v1496 = vpop.f32.mrb[0].mxu0
    %1497 = vmatprep.mubr.bf16.mxu0 0
    %1498 = vmatmul.mubr.bf16.gmra.mrb[0].mxu0 %v1455
    %v1499 = vpop.f32.mrb[0].mxu0
    %v1500 = vadd.f32 %v1438, %v1499
    %v1501 = vpop.f32.mrb[0].mxu0
    %v1502 = vpop.f32.mrb[0].mxu0
    %v1503 = vadd.f32 %v1438, %v1502
    %v1504 = vpop.f32.mrb[0].mxu0
    %1505 = vdwg.mxu0
    %v1506 = vadd.f32 %v102, %v1492
    %v1507 = vadd.f32 %v103, %v1495
    %v1508 = vadd.f32 %v104, %v1500
    %v1509 = vadd.f32 %v105, %v1503
    %v1510 = vsel %vm111, %v1506, 0.0
    %1511 = vadd.xlane.f32.xlu0 %v1510
    %v1512 = vpop.xlane.xlu0 %1511
    %v1513 = vsel %vm111, %v1507, 0.0
    %1514 = vadd.xlane.f32.xlu0 %v1513
    %v1515 = vpop.xlane.xlu0 %1514
    %v1516 = vsel %vm111, %v1508, 0.0
    %1517 = vadd.xlane.f32.xlu0 %v1516
    %v1518 = vpop.xlane.xlu0 %1517
    %v1519 = vsel %vm111, %v1509, 0.0
    %1520 = vadd.xlane.f32.xlu0 %v1519
    %v1521 = vpop.xlane.xlu0 %1520
    %v1522 = vmul.f32 %v1512, %v124
    %v1523 = vmul.f32 %v1515, %v124
    %v1524 = vmul.f32 %v1518, %v124
    %v1525 = vmul.f32 %v1521, %v124
    %v1526 = vsub.f32 %v1506, %v1522
    %v1527 = vsub.f32 %v1507, %v1523
    %v1528 = vsub.f32 %v1508, %v1524
    %v1529 = vsub.f32 %v1509, %v1525
    %v1530 = vmul.f32 %v1526, %v1526
    %v1531 = vmul.f32 %v1527, %v1527
    %v1532 = vmul.f32 %v1528, %v1528
    %v1533 = vmul.f32 %v1529, %v1529
    %v1534 = vsel %vm111, %v1530, 0.0
    %1535 = vadd.xlane.f32.xlu0 %v1534
    %v1536 = vpop.xlane.xlu0 %1535
    %v1537 = vsel %vm111, %v1531, 0.0
    %1538 = vadd.xlane.f32.xlu0 %v1537
    %v1539 = vpop.xlane.xlu0 %1538
    %v1540 = vsel %vm111, %v1532, 0.0
    %1541 = vadd.xlane.f32.xlu0 %v1540
    %v1542 = vpop.xlane.xlu0 %1541
    %v1543 = vsel %vm111, %v1533, 0.0
    %1544 = vadd.xlane.f32.xlu0 %v1543
    %v1545 = vpop.xlane.xlu0 %1544
    %v1546 = vmul.f32 %v1536, %v124
    %v1547 = vmul.f32 %v1539, %v124
    %v1548 = vmul.f32 %v1542, %v124
    %v1549 = vmul.f32 %v1545, %v124
    %v1550 = vadd.f32 %v1546, 1e-05
    %v1551 = vadd.f32 %v1547, 1e-05
    %v1552 = vadd.f32 %v1548, 1e-05
    %v1553 = vadd.f32 %v1549, 1e-05
    %v1554 = vrsqrt.pop %v1550
    %v1555 = vrsqrt.pop %v1551
    %v1556 = vrsqrt.pop %v1552
    %v1557 = vrsqrt.pop %v1553
    %v1558 = vmul.f32 %v1526, %v1554
    %v1559 = vmul.f32 %v1527, %v1555
    %v1560 = vmul.f32 %v1528, %v1556
    %v1561 = vmul.f32 %v1529, %v1557
    %v1562 = vlaneseq
    %v1563 = vshrl.u32 %v1562, 7
    %v1564 = vsub.s32 4, %v1563
    %v1565 = vrot.slane %v108, %v1564
    %v1566 = vmul.f32 %v1558, %v1565
    %v1567 = vmul.f32 %v1559, %v1565
    %v1568 = vmul.f32 %v1560, %v1565
    %v1569 = vmul.f32 %v1561, %v1565
    %v1570 = vlaneseq
    %v1571 = vshrl.u32 %v1570, 7
    %v1572 = vsub.s32 5, %v1571
    %v1573 = vrot.slane %v108, %v1572
    %v1574 = vadd.f32 %v1566, %v1573
    %v1575 = vadd.f32 %v1567, %v1573
    %v1576 = vadd.f32 %v1568, %v1573
    %v1577 = vadd.f32 %v1569, %v1573
    %v1578 = vpack.c.bf16 %v1575, %v1574
    %v1579 = vpack.c.bf16 %v1577, %v1576
    %v1580 = vld [vmem:[#allocation8] sm:$0xf]
    %v1581 = vld [vmem:[#allocation8 + $0x4] sm:$0xf]
    %v1582 = vld [vmem:[#allocation8 + $0x8] sm:$0xf]
    %v1583 = vld [vmem:[#allocation8 + $0xc] sm:$0xf]
    %v1584 = vlaneseq
    %v1585 = vshrl.u32 %v1584, 7
    %v1586 = vsub.s32 2, %v1585
    %v1587 = vrot.slane %v110, %v1586
    %v1592 = vunpack.c.l.b16 %v1580
    %v1593 = vunpack.c.l.b16 %v1581
    %v1594 = vunpack.c.l.b16 %v1582
    %v1595 = vunpack.c.l.b16 %v1583
    %v1596 = vpack.c.b16 %v1593, %v1592
    %v1597 = vpack.c.b16 %v1595, %v1594
    %v1601 = vsel %vm111, %v1578, 0
    %v1604 = vsel %vm111, %v1579, 0
    %1606 = vmatprep.subr.bf16.mxu0 0
    %1607 = vmatpush1.bf16.msra.mxu0 %v1596
    %1608 = vmatprep.subr.bf16.mxu0 0
    %1609 = vmatpush1.bf16.msra.mxu0 %v1597
    %1610 = vmatprep.subr.bf16.mxu0 0
    %1611 = vmatpush1.bf16.msra.mxu0 0
    %1612 = vmatprep.subr.bf16.mxu0 0
    %1613 = vmatpush1.bf16.msra.mxu0 0
    %1614 = vmatprep.subr.bf16.mxu0 0
    %1615 = vmatpush1.bf16.msra.mxu0 0
    %1616 = vmatprep.subr.bf16.mxu0 0
    %1617 = vmatpush1.bf16.msra.mxu0 0
    %1618 = vmatprep.subr.bf16.mxu0 0
    %1619 = vmatpush1.bf16.msra.mxu0 0
    %1620 = vmatprep.subr.bf16.mxu0 0
    %1621 = vmatpush1.bf16.msra.mxu0 0
    %1622 = vmatprep.subr.bf16.mxu0 0
    %1623 = vmatpush1.bf16.msra.mxu0 0
    %1624 = vmatprep.subr.bf16.mxu0 0
    %1625 = vmatpush1.bf16.msra.mxu0 0
    %1626 = vmatprep.subr.bf16.mxu0 0
    %1627 = vmatpush1.bf16.msra.mxu0 0
    %1628 = vmatprep.subr.bf16.mxu0 0
    %1629 = vmatpush1.bf16.msra.mxu0 0
    %1630 = vmatprep.subr.bf16.mxu0 0
    %1631 = vmatpush1.bf16.msra.mxu0 0
    %1632 = vmatprep.subr.bf16.mxu0 0
    %1633 = vmatpush1.bf16.msra.mxu0 0
    %1634 = vmatprep.subr.bf16.mxu0 0
    %1635 = vmatpush1.bf16.msra.mxu0 0
    %1636 = vmatprep.subr.bf16.mxu0 0
    %1637 = vmatpush1.bf16.msra.mxu0 0
    %1638 = vmatprep.mubr.bf16.mxu0 0
    %1639 = vmatmul.mubr.bf16.gmra.mrb[0].mxu0 %v1601
    %v1640 = vpop.f32.mrb[0].mxu0
    %v1641 = vadd.f32 %v1587, %v1640
    %v1642 = vpop.f32.mrb[0].mxu0
    %v1643 = vpop.f32.mrb[0].mxu0
    %v1644 = vadd.f32 %v1587, %v1643
    %v1645 = vpop.f32.mrb[0].mxu0
    %1646 = vmatprep.mubr.bf16.mxu0 0
    %1647 = vmatmul.mubr.bf16.gmra.mrb[0].mxu0 %v1604
    %v1648 = vpop.f32.mrb[0].mxu0
    %v1649 = vadd.f32 %v1587, %v1648
    %v1650 = vpop.f32.mrb[0].mxu0
    %v1651 = vpop.f32.mrb[0].mxu0
    %v1652 = vadd.f32 %v1587, %v1651
    %v1653 = vpop.f32.mrb[0].mxu0
    %1654 = vdwg.mxu0
    %v1655 = vmul.f32 %v1641, %v1641
    %v1656 = vmul.f32 %v1644, %v1644
    %v1657 = vmul.f32 %v1649, %v1649
    %v1658 = vmul.f32 %v1652, %v1652
    %v1659 = vmul.f32 %v1641, %v1655
    %v1660 = vmul.f32 %v1644, %v1656
    %v1661 = vmul.f32 %v1649, %v1657
    %v1662 = vmul.f32 %v1652, %v1658
    %v1663 = vmul.f32 %v1659, 0.044715
    %v1664 = vmul.f32 %v1660, 0.044715
    %v1665 = vmul.f32 %v1661, 0.044715
    %v1666 = vmul.f32 %v1662, 0.044715
    %v1667 = vadd.f32 %v1641, %v1663
    %v1668 = vadd.f32 %v1644, %v1664
    %v1669 = vadd.f32 %v1649, %v1665
    %v1670 = vadd.f32 %v1652, %v1666
    %v1671 = vmul.f32 %v1667, 0.7978846
    %v1672 = vmul.f32 %v1668, 0.7978846
    %v1673 = vmul.f32 %v1669, 0.7978846
    %v1674 = vmul.f32 %v1670, 0.7978846
    %v1675 = vtanh.pop %v1671
    %v1676 = vtanh.pop %v1672
    %v1677 = vtanh.pop %v1673
    %v1678 = vtanh.pop %v1674
    %v1679 = vadd.f32 %v1675, 1.0
    %v1680 = vadd.f32 %v1676, 1.0
    %v1681 = vadd.f32 %v1677, 1.0
    %v1682 = vadd.f32 %v1678, 1.0
    %v1683 = vmul.f32 %v1679, 0.5
    %v1684 = vmul.f32 %v1680, 0.5
    %v1685 = vmul.f32 %v1681, 0.5
    %v1686 = vmul.f32 %v1682, 0.5
    %v1687 = vmul.f32 %v1641, %v1683
    %v1688 = vmul.f32 %v1644, %v1684
    %v1689 = vmul.f32 %v1649, %v1685
    %v1690 = vmul.f32 %v1652, %v1686
    %vm1691 = vcmask 523264
    %v1692 = vsel %vm1691, %v1687, 0.0
    %1693 = vadd.xlane.f32.xlu0 %v1692
    %v1694 = vpop.xlane.xlu0 %1693
    %v1695 = vsel %vm1691, %v1688, 0.0
    %1696 = vadd.xlane.f32.xlu0 %v1695
    %v1697 = vpop.xlane.xlu0 %1696
    %v1698 = vsel %vm1691, %v1689, 0.0
    %1699 = vadd.xlane.f32.xlu0 %v1698
    %v1700 = vpop.xlane.xlu0 %1699
    %v1701 = vsel %vm1691, %v1690, 0.0
    %1702 = vadd.xlane.f32.xlu0 %v1701
    %v1703 = vpop.xlane.xlu0 %1702
    %v1704 = vrcp.pop 64.0
    %v1705 = vmul.f32 %v1694, %v1704
    %v1706 = vmul.f32 %v1697, %v1704
    %v1707 = vmul.f32 %v1700, %v1704
    %v1708 = vmul.f32 %v1703, %v1704
    %v1709 = vsub.f32 %v1687, %v1705
    %v1710 = vsub.f32 %v1688, %v1706
    %v1711 = vsub.f32 %v1689, %v1707
    %v1712 = vsub.f32 %v1690, %v1708
    %v1713 = vmul.f32 %v1709, %v1709
    %v1714 = vmul.f32 %v1710, %v1710
    %v1715 = vmul.f32 %v1711, %v1711
    %v1716 = vmul.f32 %v1712, %v1712
    %v1717 = vsel %vm1691, %v1713, 0.0
    %1718 = vadd.xlane.f32.xlu0 %v1717
    %v1719 = vpop.xlane.xlu0 %1718
    %v1720 = vsel %vm1691, %v1714, 0.0
    %1721 = vadd.xlane.f32.xlu0 %v1720
    %v1722 = vpop.xlane.xlu0 %1721
    %v1723 = vsel %vm1691, %v1715, 0.0
    %1724 = vadd.xlane.f32.xlu0 %v1723
    %v1725 = vpop.xlane.xlu0 %1724
    %v1726 = vsel %vm1691, %v1716, 0.0
    %1727 = vadd.xlane.f32.xlu0 %v1726
    %v1728 = vpop.xlane.xlu0 %1727
    %v1729 = vmul.f32 %v1719, %v1704
    %v1730 = vmul.f32 %v1722, %v1704
    %v1731 = vmul.f32 %v1725, %v1704
    %v1732 = vmul.f32 %v1728, %v1704
    %v1733 = vadd.f32 %v1729, 1e-05
    %v1734 = vadd.f32 %v1730, 1e-05
    %v1735 = vadd.f32 %v1731, 1e-05
    %v1736 = vadd.f32 %v1732, 1e-05
    %v1737 = vrsqrt.pop %v1733
    %v1738 = vrsqrt.pop %v1734
    %v1739 = vrsqrt.pop %v1735
    %v1740 = vrsqrt.pop %v1736
    %v1741 = vmul.f32 %v1709, %v1737
    %v1742 = vmul.f32 %v1710, %v1738
    %v1743 = vmul.f32 %v1711, %v1739
    %v1744 = vmul.f32 %v1712, %v1740
    %v1745 = vlaneseq
    %v1746 = vshrl.u32 %v1745, 7
    %v1747 = vsub.s32 0, %v1746
    %v1748 = vrot.slane %v110, %v1747
    %v1749 = vmul.f32 %v1741, %v1748
    %v1750 = vmul.f32 %v1742, %v1748
    %v1751 = vmul.f32 %v1743, %v1748
    %v1752 = vmul.f32 %v1744, %v1748
    %v1753 = vlaneseq
    %v1754 = vshrl.u32 %v1753, 7
    %v1755 = vsub.s32 1, %v1754
    %v1756 = vrot.slane %v110, %v1755
    %v1757 = vadd.f32 %v1749, %v1756
    %v1758 = vadd.f32 %v1750, %v1756
    %v1759 = vadd.f32 %v1751, %v1756
    %v1760 = vadd.f32 %v1752, %v1756
    %v1761 = vpack.c.bf16 %v1758, %v1757
    %v1762 = vpack.c.bf16 %v1760, %v1759
    %v1763 = vld [vmem:[%s6] sm:$0xf]
    %v1764 = vld [vmem:[%s6 + $0x4] sm:$0xf]
    %v1765 = vld [vmem:[%s6 + $0x8] sm:$0xf]
    %v1766 = vld [vmem:[%s6 + $0xc] sm:$0xf]
    %v1767 = vld [vmem:[%s6 + $0x10] sm:$0xf]
    %v1768 = vld [vmem:[%s6 + $0x14] sm:$0xf]
    %v1769 = vld [vmem:[%s6 + $0x18] sm:$0xf]
    %v1770 = vld [vmem:[%s6 + $0x1c] sm:$0xf]
    %v1771 = vlaneseq
    %v1772 = vshrl.u32 %v1771, 7
    %v1773 = vsub.s32 2, %v1772
    %v1774 = vrot.slane %v109, %v1773
    %v1783 = vunpack.c.l.b16 %v1763
    %v1784 = vunpack.c.l.b16 %v1764
    %v1785 = vunpack.c.l.b16 %v1765
    %v1786 = vunpack.c.l.b16 %v1766
    %v1787 = vunpack.c.l.b16 %v1767
    %v1788 = vunpack.c.l.b16 %v1768
    %v1789 = vunpack.c.l.b16 %v1769
    %v1790 = vunpack.c.l.b16 %v1770
    %v1791 = vpack.c.b16 %v1784, %v1783
    %v1792 = vpack.c.b16 %v1786, %v1785
    %v1793 = vpack.c.b16 %v1788, %v1787
    %v1794 = vpack.c.b16 %v1790, %v1789
    %v1800 = vsel %vm1691, %v1761, 0
    %v1803 = vsel %vm1691, %v1762, 0
    %1805 = vmatprep.subr.bf16.mxu0 0
    %1806 = vmatpush1.bf16.msra.mxu0 %v1791
    %1807 = vmatprep.subr.bf16.mxu0 0
    %1808 = vmatpush1.bf16.msra.mxu0 %v1792
    %1809 = vmatprep.subr.bf16.mxu0 0
    %1810 = vmatpush1.bf16.msra.mxu0 %v1793
    %1811 = vmatprep.subr.bf16.mxu0 0
    %1812 = vmatpush1.bf16.msra.mxu0 %v1794
    %1813 = vmatprep.subr.bf16.mxu0 0
    %1814 = vmatpush1.bf16.msra.mxu0 0
    %1815 = vmatprep.subr.bf16.mxu0 0
    %1816 = vmatpush1.bf16.msra.mxu0 0
    %1817 = vmatprep.subr.bf16.mxu0 0
    %1818 = vmatpush1.bf16.msra.mxu0 0
    %1819 = vmatprep.subr.bf16.mxu0 0
    %1820 = vmatpush1.bf16.msra.mxu0 0
    %1821 = vmatprep.subr.bf16.mxu0 0
    %1822 = vmatpush1.bf16.msra.mxu0 0
    %1823 = vmatprep.subr.bf16.mxu0 0
    %1824 = vmatpush1.bf16.msra.mxu0 0
    %1825 = vmatprep.subr.bf16.mxu0 0
    %1826 = vmatpush1.bf16.msra.mxu0 0
    %1827 = vmatprep.subr.bf16.mxu0 0
    %1828 = vmatpush1.bf16.msra.mxu0 0
    %1829 = vmatprep.subr.bf16.mxu0 0
    %1830 = vmatpush1.bf16.msra.mxu0 0
    %1831 = vmatprep.subr.bf16.mxu0 0
    %1832 = vmatpush1.bf16.msra.mxu0 0
    %1833 = vmatprep.subr.bf16.mxu0 0
    %1834 = vmatpush1.bf16.msra.mxu0 0
    %1835 = vmatprep.subr.bf16.mxu0 0
    %1836 = vmatpush1.bf16.msra.mxu0 0
    %1837 = vmatprep.mubr.bf16.mxu0 0
    %1838 = vmatmul.mubr.bf16.gmra.mrb[0].mxu0 %v1800
    %v1839 = vpop.f32.mrb[0].mxu0
    %v1840 = vadd.f32 %v1774, %v1839
    %v1841 = vpop.f32.mrb[0].mxu0
    %v1842 = vpop.f32.mrb[0].mxu0
    %v1843 = vadd.f32 %v1774, %v1842
    %v1844 = vpop.f32.mrb[0].mxu0
    %1845 = vmatprep.mubr.bf16.mxu0 0
    %1846 = vmatmul.mubr.bf16.gmra.mrb[0].mxu0 %v1803
    %v1847 = vpop.f32.mrb[0].mxu0
    %v1848 = vadd.f32 %v1774, %v1847
    %v1849 = vpop.f32.mrb[0].mxu0
    %v1850 = vpop.f32.mrb[0].mxu0
    %v1851 = vadd.f32 %v1774, %v1850
    %v1852 = vpop.f32.mrb[0].mxu0
    %1853 = vdwg.mxu0
    %v1854 = vadd.f32 %v1506, %v1840
    %v1855 = vadd.f32 %v1507, %v1843
    %v1856 = vadd.f32 %v1508, %v1848
    %v1857 = vadd.f32 %v1509, %v1851
    %1858 = vst.msk [vmem:[#allocation11] sm:$0xff] %vm111, %v1854
    %1859 = vst.msk [vmem:[#allocation11 + $0x8] sm:$0xff] %vm111, %v1855
    %1860 = vst.msk [vmem:[#allocation11 + $0x10] sm:$0xff] %vm111, %v1856
    %1861 = vst.msk [vmem:[#allocation11 + $0x18] sm:$0xff] %vm111, %v1857
    // Predicated region
    $region58: #{tpu_custom_call.1} parent=1 // pred_check
      _
    $region59: #{tpu_custom_call.1} parent=1 // pred_check_branch
      %1863 = sbr.rel (0) target = $region61
    $region60: #{tpu_custom_call.1} parent=1 // pred_region
      %s1865 = ssub.s32 512, 512
      %1866 = vsyncadd [#allocation4], %s1865
      %s1867 = sshll.u32 [#allocation11], 4
      %s1868 = int_to_ptr.vmem [resolvable:$true] %s1867
      %1873 = dma.vmem_to_hbm [thread:$0]  %s1868, 512, %s9, [#allocation4], 128, 128, 8
    $region61: #{tpu_custom_call.1} parent=1 // pred_fallthru
      _
    // Predicated region
    $region62: #{tpu_custom_call.1} parent=1 // pred_check
      _
    $region63: #{tpu_custom_call.1} parent=1 // pred_check_branch
      %1875 = sbr.rel (0) target = $region65
    $region64: #{tpu_custom_call.1} parent=1 // pred_region
      %1876 = dma.done [#allocation4], 512
    $region65: #{tpu_custom_call.1} parent=1 // pred_fallthru
      _
    %1877 = vsyncpa [#allocation3], 1
    %1878 = vsyncpa [#allocation6], 1
    %1879 = vsyncpa [#allocation9], 1
    %1880 = vsyncpa [#allocation4], 1

</llo_original>
